<compile_context>
chip_gen: v6e
topology: v6e:2x2x1
jax: 0.10.0
libtpu: 0.0.40
codegen_flags: <defaults>
</compile_context>

<pallas_src>
import math
from functools import partial

import jax
import jax.numpy as jnp
from jax.experimental import pallas as pl
from jax.experimental.pallas import tpu as pltpu  # noqa: F401  (TPU backend assumed)

RMS_EPS = 1e-5
LN_EPS = 1e-5

_LAYER_PARAMS = (
    'rms_w', 'w_in_x', 'w_in_res', 'conv_w_last', 'conv_b',
    'w_x_dt', 'w_x_B', 'w_x_C', 'w_dt', 'b_dt', 'Dp', 'w_out',
    'ln2_w', 'ln2_b', 'w1', 'b1', 'w2', 'b2',
)

_INV_SQRT2 = 1.0 / math.sqrt(2.0)


def _erf(z):
    # Abramowitz & Stegun 7.1.26 rational approximation (max abs err ~1.5e-7),
    # built only from abs/exp/where/div which lower cleanly in Mosaic.
    # TODO(synk): switch to lax.erf if erf_p lowering inside Mosaic is relied upon.
    p = 0.3275911
    a1, a2, a3, a4, a5 = (0.254829592, -0.284496736, 1.421413741,
                          -1.453152027, 1.061405429)
    az = jnp.abs(z)
    t = 1.0 / (1.0 + p * az)
    poly = ((((a5 * t + a4) * t + a3) * t + a2) * t + a1) * t
    e = 1.0 - poly * jnp.exp(-az * az)
    return jnp.where(z < 0.0, -e, e)


def _gelu_exact(x):
    # nn.GELU() default (exact erf form).
    return 0.5 * x * (1.0 + _erf(x * _INV_SQRT2))


def _layernorm(x, w, b):
    mu = jnp.mean(x, axis=-1, keepdims=True)
    var = jnp.mean((x - mu) ** 2, axis=-1, keepdims=True)
    return (x - mu) * jax.lax.rsqrt(var + LN_EPS) * w + b


# ------------------------------ fused kernel --------------------------------

def _fused_gpt2_kernel(x_ref,
                       rms_w_ref, w_in_x_ref, w_in_res_ref, conv_w_ref, conv_b_ref,
                       w_x_dt_ref, w_x_b_ref, w_x_c_ref, w_dt_ref, b_dt_ref, dD_ref,
                       w_out_ref, ln2_w_ref, ln2_b_ref, w1_ref, b1_ref, w2_ref, b2_ref,
                       lnf_w_ref, lnf_b_ref, o_ref,
                       *, n_layer, batch, seqlen, d_inner):
    # x_ref: (B*L, D) whole activation slab, resident in VMEM for the full model.
    x = x_ref[...]

    for layer in range(n_layer):          # static unroll; all weights already in VMEM
        # ---- RMSNorm (pre-norm) --------------------------------------------
        xn = x * jax.lax.rsqrt(jnp.mean(x * x, axis=-1, keepdims=True) + RMS_EPS)
        xn = xn * rms_w_ref[layer]

        # ---- in_proj, gate branch over all tokens ---------------------------
        res = jnp.dot(xn, w_in_res_ref[layer],
                      preferred_element_type=jnp.float32)            # (M, DI)

        # ---- conv/ssm branch: the module keeps only conv output position 0,
        #      which (left zero pad of d_conv-1) only sees x[t=0], so the
        #      x-branch in_proj is needed for the t=0 row of each batch only.
        xn0 = jnp.concatenate(
            [xn[b * seqlen:b * seqlen + 1, :] for b in range(batch)], axis=0)   # (B, D)
        xm0 = jnp.dot(xn0, w_in_x_ref[layer],
                      preferred_element_type=jnp.float32)            # (B, DI)
        x0 = xm0 * conv_w_ref[layer] + conv_b_ref[layer]   # bias + w[:, -1] * x[t=0]
        xs = x0 * jax.nn.sigmoid(x0)                       # SiLU

        # ---- x_proj as three lane-aligned dots (no lane-offset slicing) -----
        dr = jnp.dot(xs, w_x_dt_ref[layer], preferred_element_type=jnp.float32)  # (B, R)
        Bm = jnp.dot(xs, w_x_b_ref[layer], preferred_element_type=jnp.float32)   # (B, N)
        Cm = jnp.dot(xs, w_x_c_ref[layer], preferred_element_type=jnp.float32)   # (B, N)
        delta = jax.nn.softplus(
            jnp.dot(dr, w_dt_ref[layer], preferred_element_type=jnp.float32)
            + b_dt_ref[layer])                                                   # (B, DI)

        # ---- selective scan with effective length 1 and zero initial state:
        #      y = delta * u * sum_n(B_n*C_n) + u * D   (exp(delta*A) hits zero state)
        s = jnp.sum(Bm * Cm, axis=-1, keepdims=True)                             # (B, 1)
        y0 = delta * xs * s + xs * dD_ref[layer]                                 # (B, DI)

        # ---- gate with SiLU(res); broadcast y0 over the sequence -------------
        y0_full = jnp.concatenate(
            [jnp.broadcast_to(y0[b:b + 1, :], (seqlen, d_inner)) for b in range(batch)],
            axis=0)                                                              # (M, DI)
        y = y0_full * (res * jax.nn.sigmoid(res))

        # ---- out_proj + residual ---------------------------------------------
        x = x + jnp.dot(y, w_out_ref[layer], preferred_element_type=jnp.float32)

        # ---- MLP: ln_2 -> fc1 -> exact GELU -> fc2 -> residual (all in-kernel)
        h = _layernorm(x, ln2_w_ref[layer], ln2_b_ref[layer])
        h1 = jnp.dot(h, w1_ref[layer], preferred_element_type=jnp.float32) + b1_ref[layer]
        g = _gelu_exact(h1)
        x = x + jnp.dot(g, w2_ref[layer], preferred_element_type=jnp.float32) + b2_ref[layer]

    # ---- final ln_f ----------------------------------------------------------
    o_ref[...] = _layernorm(x, lnf_w_ref[...], lnf_b_ref[...])


# -------------------------------- wrapper ------------------------------------

def gpt2_forward(x, params, *, n_layer):
    B, L, D = x.shape
    M = B * L
    d_inner = params['w_out'].shape[1]
    kernel = partial(_fused_gpt2_kernel, n_layer=n_layer, batch=B, seqlen=L,
                     d_inner=d_inner)
    args = ([x.reshape(M, D)]
            + [params[k] for k in _LAYER_PARAMS]
            + [params['lnf_w'], params['lnf_b']])
    # No grid and no explicit BlockSpecs: every operand is mapped whole into VMEM
    # (total footprint ~0.1 MB), one kernel invocation for the entire model.
    out = pl.pallas_call(
        kernel,
        out_shape=jax.ShapeDtypeStruct((M, D), x.dtype),
    )(*args)
    return out.reshape(B, L, D)


# ------------------------ deterministic parameter init ------------------------

def init_params(key, n_embd, n_inner, n_layer, d_inner, d_state, dt_rank, d_conv,
                dt_min=0.001, dt_max=0.1, dt_init_floor=1e-4):
    layers = []
    for _ in range(n_layer):
        key, *ks = jax.random.split(key, 16)
        dt_std = dt_rank ** (-0.5)
        u = jax.random.uniform(ks[0], (d_inner,))
        dt = jnp.exp(u * (math.log(dt_max) - math.log(dt_min)) + math.log(dt_min))
        dt = jnp.maximum(dt, dt_init_floor)
        inv_dt = dt + jnp.log(-jnp.expm1(-dt))
        conv_w = 0.3 * jax.random.normal(ks[1], (d_inner, 1, d_conv))   # full Conv1d weight
        layers.append(dict(
            rms_w=1.0 + 0.1 * jax.random.normal(ks[2], (1, n_embd)),
            w_in_x=0.15 * jax.random.normal(ks[3], (n_embd, d_inner)),    # in_proj.weight.T[:, :DI]
            w_in_res=0.15 * jax.random.normal(ks[4], (n_embd, d_inner)),  # in_proj.weight.T[:, DI:]
            conv_w_last=conv_w[:, 0, -1].reshape(1, d_inner),  # only tap seeing real data at t=0
            conv_b=0.1 * jax.random.normal(ks[5], (1, d_inner)),
            w_x_dt=0.15 * jax.random.normal(ks[6], (d_inner, dt_rank)),   # x_proj.weight.T splits
            w_x_B=0.15 * jax.random.normal(ks[7], (d_inner, d_state)),
            w_x_C=0.15 * jax.random.normal(ks[8], (d_inner, d_state)),
            w_dt=dt_std * jax.random.uniform(ks[9], (dt_rank, d_inner), minval=-1.0, maxval=1.0),
            b_dt=inv_dt.reshape(1, d_inner),
            Dp=jnp.ones((1, d_inner), jnp.float32),
            w_out=0.15 * jax.random.normal(ks[10], (d_inner, n_embd)),    # out_proj.weight.T
            ln2_w=jnp.ones((1, n_embd), jnp.float32),
            ln2_b=jnp.zeros((1, n_embd), jnp.float32),
            w1=0.15 * jax.random.normal(ks[11], (n_embd, n_inner)),
            b1=0.05 * jax.random.normal(ks[12], (1, n_inner)),
            w2=0.15 * jax.random.normal(ks[13], (n_inner, n_embd)),
            b2=0.05 * jax.random.normal(ks[14], (1, n_embd)),
        ))
    params = {k: jnp.stack([lyr[k] for lyr in layers]) for k in layers[0]}
    params['lnf_w'] = jnp.ones((1, n_embd), jnp.float32)
    params['lnf_b'] = jnp.zeros((1, n_embd), jnp.float32)
    return params


# ------------------------------ pure-JAX reference ----------------------------

def ref_forward(x, params, *, n_layer):
    def ln(v, w, b):
        mu = jnp.mean(v, -1, keepdims=True)
        var = jnp.mean((v - mu) ** 2, -1, keepdims=True)
        return (v - mu) * jax.lax.rsqrt(var + LN_EPS) * w[0] + b[0]

    for i in range(n_layer):
        g = lambda k: params[k][i]
        xn = x * jax.lax.rsqrt(jnp.mean(x * x, -1, keepdims=True) + RMS_EPS) * g('rms_w')[0]
        res = xn @ g('w_in_res')
        x0 = (xn[:, 0, :] @ g('w_in_x')) * g('conv_w_last')[0] + g('conv_b')[0]
        xs = jax.nn.silu(x0)
        dr = xs @ g('w_x_dt')
        Bm = xs @ g('w_x_B')
        Cm = xs @ g('w_x_C')
        delta = jax.nn.softplus(dr @ g('w_dt') + g('b_dt')[0])
        y0 = jnp.einsum('bd,bn,bd,bn->bd', delta, Bm, xs, Cm) + xs * g('Dp')[0]
        y = y0[:, None, :] * jax.nn.silu(res)
        x = x + y @ g('w_out')
        h = ln(x, g('ln2_w'), g('ln2_b'))
        m = jax.nn.gelu(h @ g('w1') + g('b1')[0], approximate=False) @ g('w2') + g('b2')[0]
        x = x + m
    return ln(x, params['lnf_w'], params['lnf_b'])


# ----------------------------------- main --------------------------------------

if __name__ == "__main__":
    # GPT2Model(n_embd=32, n_inner=64, embd_drop=0., drop_p=0., n_layer=2, layer_norm_epsilon=1e-5)
    B, L = 2, 8
    n_embd, n_inner, n_layer = 32, 64, 2
    d_state, expand, d_conv = 16, 2, 4
    d_inner = expand * n_embd                 # 64
    dt_rank = math.ceil(n_embd / 16)          # 2

    key = jax.random.PRNGKey(0)
    key, kx = jax.random.split(key)
    input_embeds = jax.random.normal(kx, (B, L, n_embd), dtype=jnp.float32)

    params = init_params(key, n_embd, n_inner, n_layer, d_inner, d_state, dt_rank, d_conv)

    out = gpt2_forward(input_embeds, params, n_layer=n_layer)
    out = jax.block_until_ready(out)

    ref = ref_forward(input_embeds, params, n_layer=n_layer)

    assert out.shape == (B, L, n_embd)
    assert bool(jnp.all(jnp.isfinite(out)))
    max_err = float(jnp.max(jnp.abs(out - ref)))
    assert bool(jnp.allclose(out, ref, atol=1e-4, rtol=1e-4)), max_err
    print("KERNEL_OK")
</pallas_src>

<mosaic_0001>
module attributes {stable_mosaic.version = 11 : i64} {
  func.func @_fused_gpt2_kernel(%arg0: memref<16x32xf32, #tpu.memory_space<vmem>>, %arg1: memref<2x1x32xf32, #tpu.memory_space<vmem>>, %arg2: memref<2x32x64xf32, #tpu.memory_space<vmem>>, %arg3: memref<2x32x64xf32, #tpu.memory_space<vmem>>, %arg4: memref<2x1x64xf32, #tpu.memory_space<vmem>>, %arg5: memref<2x1x64xf32, #tpu.memory_space<vmem>>, %arg6: memref<2x64x2xf32, #tpu.memory_space<vmem>>, %arg7: memref<2x64x16xf32, #tpu.memory_space<vmem>>, %arg8: memref<2x64x16xf32, #tpu.memory_space<vmem>>, %arg9: memref<2x2x64xf32, #tpu.memory_space<vmem>>, %arg10: memref<2x1x64xf32, #tpu.memory_space<vmem>>, %arg11: memref<2x1x64xf32, #tpu.memory_space<vmem>>, %arg12: memref<2x64x32xf32, #tpu.memory_space<vmem>>, %arg13: memref<2x1x32xf32, #tpu.memory_space<vmem>>, %arg14: memref<2x1x32xf32, #tpu.memory_space<vmem>>, %arg15: memref<2x32x64xf32, #tpu.memory_space<vmem>>, %arg16: memref<2x1x64xf32, #tpu.memory_space<vmem>>, %arg17: memref<2x64x32xf32, #tpu.memory_space<vmem>>, %arg18: memref<2x1x32xf32, #tpu.memory_space<vmem>>, %arg19: memref<1x32xf32, #tpu.memory_space<vmem>>, %arg20: memref<1x32xf32, #tpu.memory_space<vmem>>, %arg21: memref<16x32xf32, #tpu.memory_space<vmem>>) attributes {dimension_semantics = [], scalar_prefetch = 0 : i64, scratch_operands = 0 : i64, tpu.core_type = #tpu.core_type<tc>} {
    %c0 = arith.constant 0 : index
    %c0_0 = arith.constant 0 : index
    %0 = vector.load %arg0[%c0, %c0_0] : memref<16x32xf32, #tpu.memory_space<vmem>>, vector<16x32xf32>
    %1 = arith.mulf %0, %0 : vector<16x32xf32>
    %cst = arith.constant dense<0.000000e+00> : vector<16xf32>
    %2 = vector.multi_reduction <add>, %1, %cst [1] : vector<16x32xf32> to vector<16xf32>
    %3 = vector.shape_cast %2 : vector<16xf32> to vector<16x1xf32>
    %cst_1 = arith.constant 3.200000e+01 : f32
    %4 = vector.broadcast %cst_1 : f32 to vector<16x1xf32>
    %5 = arith.divf %3, %4 : vector<16x1xf32>
    %cst_2 = arith.constant 9.99999974E-6 : f32
    %6 = vector.broadcast %cst_2 : f32 to vector<16x1xf32>
    %7 = arith.addf %5, %6 : vector<16x1xf32>
    %8 = math.rsqrt %7 : vector<16x1xf32>
    %9 = vector.broadcast %8 : vector<16x1xf32> to vector<16x32xf32>
    %10 = arith.mulf %0, %9 : vector<16x32xf32>
    %c0_3 = arith.constant 0 : index
    %c0_4 = arith.constant 0 : index
    %c0_5 = arith.constant 0 : index
    %11 = vector.load %arg1[%c0_3, %c0_4, %c0_5] : memref<2x1x32xf32, #tpu.memory_space<vmem>>, vector<1x1x32xf32>
    %12 = vector.shape_cast %11 : vector<1x1x32xf32> to vector<1x32xf32>
    %13 = vector.broadcast %12 : vector<1x32xf32> to vector<16x32xf32>
    %14 = arith.mulf %10, %13 : vector<16x32xf32>
    %c0_6 = arith.constant 0 : index
    %c0_7 = arith.constant 0 : index
    %c0_8 = arith.constant 0 : index
    %15 = vector.load %arg3[%c0_6, %c0_7, %c0_8] : memref<2x32x64xf32, #tpu.memory_space<vmem>>, vector<1x32x64xf32>
    %16 = vector.shape_cast %15 : vector<1x32x64xf32> to vector<32x64xf32>
    %cst_9 = arith.constant dense<0.000000e+00> : vector<16x64xf32>
    %17 = tpu.matmul %14, %16, %cst_9 {dimension_numbers = #tpu.dot_dimension_numbers<[1], [0], [0], [1], [0, 0, 1, 1], [], []>} : vector<16x32xf32>, vector<32x64xf32>, vector<16x64xf32> -> vector<16x64xf32>
    %18 = vector.extract_strided_slice %14 {offsets = [0, 0], sizes = [1, 32], strides = [1, 1]} : vector<16x32xf32> to vector<1x32xf32>
    %19 = vector.extract_strided_slice %14 {offsets = [8, 0], sizes = [1, 32], strides = [1, 1]} : vector<16x32xf32> to vector<1x32xf32>
    %20 = tpu.concatenate %18, %19 in 0 : vector<1x32xf32>, vector<1x32xf32> -> vector<2x32xf32>
    %c0_10 = arith.constant 0 : index
    %c0_11 = arith.constant 0 : index
    %c0_12 = arith.constant 0 : index
    %21 = vector.load %arg2[%c0_10, %c0_11, %c0_12] : memref<2x32x64xf32, #tpu.memory_space<vmem>>, vector<1x32x64xf32>
    %22 = vector.shape_cast %21 : vector<1x32x64xf32> to vector<32x64xf32>
    %cst_13 = arith.constant dense<0.000000e+00> : vector<2x64xf32>
    %23 = tpu.matmul %20, %22, %cst_13 {dimension_numbers = #tpu.dot_dimension_numbers<[1], [0], [0], [1], [0, 0, 1, 1], [], []>} : vector<2x32xf32>, vector<32x64xf32>, vector<2x64xf32> -> vector<2x64xf32>
    %c0_14 = arith.constant 0 : index
    %c0_15 = arith.constant 0 : index
    %c0_16 = arith.constant 0 : index
    %24 = vector.load %arg4[%c0_14, %c0_15, %c0_16] : memref<2x1x64xf32, #tpu.memory_space<vmem>>, vector<1x1x64xf32>
    %25 = vector.shape_cast %24 : vector<1x1x64xf32> to vector<1x64xf32>
    %26 = vector.broadcast %25 : vector<1x64xf32> to vector<2x64xf32>
    %27 = arith.mulf %23, %26 : vector<2x64xf32>
    %c0_17 = arith.constant 0 : index
    %c0_18 = arith.constant 0 : index
    %c0_19 = arith.constant 0 : index
    %28 = vector.load %arg5[%c0_17, %c0_18, %c0_19] : memref<2x1x64xf32, #tpu.memory_space<vmem>>, vector<1x1x64xf32>
    %29 = vector.shape_cast %28 : vector<1x1x64xf32> to vector<1x64xf32>
    %30 = vector.broadcast %29 : vector<1x64xf32> to vector<2x64xf32>
    %31 = arith.addf %27, %30 : vector<2x64xf32>
    %32 = arith.negf %31 : vector<2x64xf32>
    %33 = math.exp %32 : vector<2x64xf32>
    %cst_20 = arith.constant 1.000000e+00 : f32
    %34 = vector.broadcast %cst_20 : f32 to vector<2x64xf32>
    %35 = arith.addf %34, %33 : vector<2x64xf32>
    %36 = arith.divf %34, %35 : vector<2x64xf32>
    %37 = arith.mulf %31, %36 : vector<2x64xf32>
    %c0_21 = arith.constant 0 : index
    %c0_22 = arith.constant 0 : index
    %c0_23 = arith.constant 0 : index
    %38 = vector.load %arg6[%c0_21, %c0_22, %c0_23] : memref<2x64x2xf32, #tpu.memory_space<vmem>>, vector<1x64x2xf32>
    %39 = vector.shape_cast %38 : vector<1x64x2xf32> to vector<64x2xf32>
    %cst_24 = arith.constant dense<0.000000e+00> : vector<2x2xf32>
    %40 = tpu.matmul %37, %39, %cst_24 {dimension_numbers = #tpu.dot_dimension_numbers<[1], [0], [0], [1], [0, 0, 1, 1], [], []>} : vector<2x64xf32>, vector<64x2xf32>, vector<2x2xf32> -> vector<2x2xf32>
    %c0_25 = arith.constant 0 : index
    %c0_26 = arith.constant 0 : index
    %c0_27 = arith.constant 0 : index
    %41 = vector.load %arg7[%c0_25, %c0_26, %c0_27] : memref<2x64x16xf32, #tpu.memory_space<vmem>>, vector<1x64x16xf32>
    %42 = vector.shape_cast %41 : vector<1x64x16xf32> to vector<64x16xf32>
    %cst_28 = arith.constant dense<0.000000e+00> : vector<2x16xf32>
    %43 = tpu.matmul %37, %42, %cst_28 {dimension_numbers = #tpu.dot_dimension_numbers<[1], [0], [0], [1], [0, 0, 1, 1], [], []>} : vector<2x64xf32>, vector<64x16xf32>, vector<2x16xf32> -> vector<2x16xf32>
    %c0_29 = arith.constant 0 : index
    %c0_30 = arith.constant 0 : index
    %c0_31 = arith.constant 0 : index
    %44 = vector.load %arg8[%c0_29, %c0_30, %c0_31] : memref<2x64x16xf32, #tpu.memory_space<vmem>>, vector<1x64x16xf32>
    %45 = vector.shape_cast %44 : vector<1x64x16xf32> to vector<64x16xf32>
    %cst_32 = arith.constant dense<0.000000e+00> : vector<2x16xf32>
    %46 = tpu.matmul %37, %45, %cst_32 {dimension_numbers = #tpu.dot_dimension_numbers<[1], [0], [0], [1], [0, 0, 1, 1], [], []>} : vector<2x64xf32>, vector<64x16xf32>, vector<2x16xf32> -> vector<2x16xf32>
    %c0_33 = arith.constant 0 : index
    %c0_34 = arith.constant 0 : index
    %c0_35 = arith.constant 0 : index
    %47 = vector.load %arg9[%c0_33, %c0_34, %c0_35] : memref<2x2x64xf32, #tpu.memory_space<vmem>>, vector<1x2x64xf32>
    %48 = vector.shape_cast %47 : vector<1x2x64xf32> to vector<2x64xf32>
    %cst_36 = arith.constant dense<0.000000e+00> : vector<2x64xf32>
    %49 = tpu.matmul %40, %48, %cst_36 {dimension_numbers = #tpu.dot_dimension_numbers<[1], [0], [0], [1], [0, 0, 1, 1], [], []>} : vector<2x2xf32>, vector<2x64xf32>, vector<2x64xf32> -> vector<2x64xf32>
    %c0_37 = arith.constant 0 : index
    %c0_38 = arith.constant 0 : index
    %c0_39 = arith.constant 0 : index
    %50 = vector.load %arg10[%c0_37, %c0_38, %c0_39] : memref<2x1x64xf32, #tpu.memory_space<vmem>>, vector<1x1x64xf32>
    %51 = vector.shape_cast %50 : vector<1x1x64xf32> to vector<1x64xf32>
    %52 = vector.broadcast %51 : vector<1x64xf32> to vector<2x64xf32>
    %53 = arith.addf %49, %52 : vector<2x64xf32>
    %cst_40 = arith.constant 0.000000e+00 : f32
    %54 = vector.broadcast %cst_40 : f32 to vector<2x64xf32>
    %55 = arith.maximumf %53, %54 : vector<2x64xf32>
    %56 = vector.broadcast %cst_40 : f32 to vector<2x64xf32>
    %57 = arith.subf %53, %56 : vector<2x64xf32>
    %58 = arith.cmpf one, %57, %57 : vector<2x64xf32>
    %59 = vector.broadcast %cst_40 : f32 to vector<2x64xf32>
    %60 = arith.addf %53, %59 : vector<2x64xf32>
    %61 = math.absf %57 : vector<2x64xf32>
    %cst_41 = arith.constant 0.000000e+00 : f32
    %62 = vector.broadcast %cst_41 : f32 to vector<2x64xf32>
    %63 = arith.subf %62, %61 : vector<2x64xf32>
    %64 = math.exp %63 : vector<2x64xf32>
    %65 = math.log1p %64 : vector<2x64xf32>
    %66 = arith.addf %55, %65 : vector<2x64xf32>
    %67 = arith.select %58, %60, %66 : vector<2x64xi1>, vector<2x64xf32>
    %68 = arith.mulf %43, %46 : vector<2x16xf32>
    %cst_42 = arith.constant dense<0.000000e+00> : vector<2xf32>
    %69 = vector.multi_reduction <add>, %68, %cst_42 [1] : vector<2x16xf32> to vector<2xf32>
    %70 = vector.shape_cast %69 : vector<2xf32> to vector<2x1xf32>
    %71 = arith.mulf %67, %37 : vector<2x64xf32>
    %72 = vector.broadcast %70 : vector<2x1xf32> to vector<2x64xf32>
    %73 = arith.mulf %71, %72 : vector<2x64xf32>
    %c0_43 = arith.constant 0 : index
    %c0_44 = arith.constant 0 : index
    %c0_45 = arith.constant 0 : index
    %74 = vector.load %arg11[%c0_43, %c0_44, %c0_45] : memref<2x1x64xf32, #tpu.memory_space<vmem>>, vector<1x1x64xf32>
    %75 = vector.shape_cast %74 : vector<1x1x64xf32> to vector<1x64xf32>
    %76 = vector.broadcast %75 : vector<1x64xf32> to vector<2x64xf32>
    %77 = arith.mulf %37, %76 : vector<2x64xf32>
    %78 = arith.addf %73, %77 : vector<2x64xf32>
    %79 = vector.extract_strided_slice %78 {offsets = [0, 0], sizes = [1, 64], strides = [1, 1]} : vector<2x64xf32> to vector<1x64xf32>
    %80 = vector.shape_cast %79 : vector<1x64xf32> to vector<1x64xf32>
    %81 = vector.broadcast %80 : vector<1x64xf32> to vector<8x64xf32>
    %82 = vector.extract_strided_slice %78 {offsets = [1, 0], sizes = [1, 64], strides = [1, 1]} : vector<2x64xf32> to vector<1x64xf32>
    %83 = vector.shape_cast %82 : vector<1x64xf32> to vector<1x64xf32>
    %84 = vector.broadcast %83 : vector<1x64xf32> to vector<8x64xf32>
    %85 = tpu.concatenate %81, %84 in 0 : vector<8x64xf32>, vector<8x64xf32> -> vector<16x64xf32>
    %86 = arith.negf %17 : vector<16x64xf32>
    %87 = math.exp %86 : vector<16x64xf32>
    %cst_46 = arith.constant 1.000000e+00 : f32
    %88 = vector.broadcast %cst_46 : f32 to vector<16x64xf32>
    %89 = arith.addf %88, %87 : vector<16x64xf32>
    %90 = arith.divf %88, %89 : vector<16x64xf32>
    %91 = arith.mulf %17, %90 : vector<16x64xf32>
    %92 = arith.mulf %85, %91 : vector<16x64xf32>
    %c0_47 = arith.constant 0 : index
    %c0_48 = arith.constant 0 : index
    %c0_49 = arith.constant 0 : index
    %93 = vector.load %arg12[%c0_47, %c0_48, %c0_49] : memref<2x64x32xf32, #tpu.memory_space<vmem>>, vector<1x64x32xf32>
    %94 = vector.shape_cast %93 : vector<1x64x32xf32> to vector<64x32xf32>
    %cst_50 = arith.constant dense<0.000000e+00> : vector<16x32xf32>
    %95 = tpu.matmul %92, %94, %cst_50 {dimension_numbers = #tpu.dot_dimension_numbers<[1], [0], [0], [1], [0, 0, 1, 1], [], []>} : vector<16x64xf32>, vector<64x32xf32>, vector<16x32xf32> -> vector<16x32xf32>
    %96 = arith.addf %0, %95 : vector<16x32xf32>
    %c0_51 = arith.constant 0 : index
    %c0_52 = arith.constant 0 : index
    %c0_53 = arith.constant 0 : index
    %97 = vector.load %arg13[%c0_51, %c0_52, %c0_53] : memref<2x1x32xf32, #tpu.memory_space<vmem>>, vector<1x1x32xf32>
    %98 = vector.shape_cast %97 : vector<1x1x32xf32> to vector<1x32xf32>
    %c0_54 = arith.constant 0 : index
    %c0_55 = arith.constant 0 : index
    %c0_56 = arith.constant 0 : index
    %99 = vector.load %arg14[%c0_54, %c0_55, %c0_56] : memref<2x1x32xf32, #tpu.memory_space<vmem>>, vector<1x1x32xf32>
    %100 = vector.shape_cast %99 : vector<1x1x32xf32> to vector<1x32xf32>
    %cst_57 = arith.constant dense<0.000000e+00> : vector<16xf32>
    %101 = vector.multi_reduction <add>, %96, %cst_57 [1] : vector<16x32xf32> to vector<16xf32>
    %102 = vector.shape_cast %101 : vector<16xf32> to vector<16x1xf32>
    %cst_58 = arith.constant 3.200000e+01 : f32
    %103 = vector.broadcast %cst_58 : f32 to vector<16x1xf32>
    %104 = arith.divf %102, %103 : vector<16x1xf32>
    %105 = vector.broadcast %104 : vector<16x1xf32> to vector<16x32xf32>
    %106 = arith.subf %96, %105 : vector<16x32xf32>
    %107 = arith.mulf %106, %106 : vector<16x32xf32>
    %cst_59 = arith.constant dense<0.000000e+00> : vector<16xf32>
    %108 = vector.multi_reduction <add>, %107, %cst_59 [1] : vector<16x32xf32> to vector<16xf32>
    %109 = vector.shape_cast %108 : vector<16xf32> to vector<16x1xf32>
    %cst_60 = arith.constant 3.200000e+01 : f32
    %110 = vector.broadcast %cst_60 : f32 to vector<16x1xf32>
    %111 = arith.divf %109, %110 : vector<16x1xf32>
    %112 = vector.broadcast %104 : vector<16x1xf32> to vector<16x32xf32>
    %113 = arith.subf %96, %112 : vector<16x32xf32>
    %cst_61 = arith.constant 9.99999974E-6 : f32
    %114 = vector.broadcast %cst_61 : f32 to vector<16x1xf32>
    %115 = arith.addf %111, %114 : vector<16x1xf32>
    %116 = math.rsqrt %115 : vector<16x1xf32>
    %117 = vector.broadcast %116 : vector<16x1xf32> to vector<16x32xf32>
    %118 = arith.mulf %113, %117 : vector<16x32xf32>
    %119 = vector.broadcast %98 : vector<1x32xf32> to vector<16x32xf32>
    %120 = arith.mulf %118, %119 : vector<16x32xf32>
    %121 = vector.broadcast %100 : vector<1x32xf32> to vector<16x32xf32>
    %122 = arith.addf %120, %121 : vector<16x32xf32>
    %c0_62 = arith.constant 0 : index
    %c0_63 = arith.constant 0 : index
    %c0_64 = arith.constant 0 : index
    %123 = vector.load %arg15[%c0_62, %c0_63, %c0_64] : memref<2x32x64xf32, #tpu.memory_space<vmem>>, vector<1x32x64xf32>
    %124 = vector.shape_cast %123 : vector<1x32x64xf32> to vector<32x64xf32>
    %cst_65 = arith.constant dense<0.000000e+00> : vector<16x64xf32>
    %125 = tpu.matmul %122, %124, %cst_65 {dimension_numbers = #tpu.dot_dimension_numbers<[1], [0], [0], [1], [0, 0, 1, 1], [], []>} : vector<16x32xf32>, vector<32x64xf32>, vector<16x64xf32> -> vector<16x64xf32>
    %c0_66 = arith.constant 0 : index
    %c0_67 = arith.constant 0 : index
    %c0_68 = arith.constant 0 : index
    %126 = vector.load %arg16[%c0_66, %c0_67, %c0_68] : memref<2x1x64xf32, #tpu.memory_space<vmem>>, vector<1x1x64xf32>
    %127 = vector.shape_cast %126 : vector<1x1x64xf32> to vector<1x64xf32>
    %128 = vector.broadcast %127 : vector<1x64xf32> to vector<16x64xf32>
    %129 = arith.addf %125, %128 : vector<16x64xf32>
    %cst_69 = arith.constant 5.000000e-01 : f32
    %130 = vector.broadcast %cst_69 : f32 to vector<16x64xf32>
    %131 = arith.mulf %130, %129 : vector<16x64xf32>
    %cst_70 = arith.constant 0.707106769 : f32
    %132 = vector.broadcast %cst_70 : f32 to vector<16x64xf32>
    %133 = arith.mulf %129, %132 : vector<16x64xf32>
    %134 = math.absf %133 : vector<16x64xf32>
    %cst_71 = arith.constant 0.327591091 : f32
    %135 = vector.broadcast %cst_71 : f32 to vector<16x64xf32>
    %136 = arith.mulf %135, %134 : vector<16x64xf32>
    %cst_72 = arith.constant 1.000000e+00 : f32
    %137 = vector.broadcast %cst_72 : f32 to vector<16x64xf32>
    %138 = arith.addf %137, %136 : vector<16x64xf32>
    %cst_73 = arith.constant 1.000000e+00 : f32
    %139 = vector.broadcast %cst_73 : f32 to vector<16x64xf32>
    %140 = arith.divf %139, %138 : vector<16x64xf32>
    %cst_74 = arith.constant 1.06140542 : f32
    %141 = vector.broadcast %cst_74 : f32 to vector<16x64xf32>
    %142 = arith.mulf %141, %140 : vector<16x64xf32>
    %cst_75 = arith.constant -1.45315206 : f32
    %143 = vector.broadcast %cst_75 : f32 to vector<16x64xf32>
    %144 = arith.addf %142, %143 : vector<16x64xf32>
    %145 = arith.mulf %144, %140 : vector<16x64xf32>
    %cst_76 = arith.constant 1.42141378 : f32
    %146 = vector.broadcast %cst_76 : f32 to vector<16x64xf32>
    %147 = arith.addf %145, %146 : vector<16x64xf32>
    %148 = arith.mulf %147, %140 : vector<16x64xf32>
    %cst_77 = arith.constant -0.284496725 : f32
    %149 = vector.broadcast %cst_77 : f32 to vector<16x64xf32>
    %150 = arith.addf %148, %149 : vector<16x64xf32>
    %151 = arith.mulf %150, %140 : vector<16x64xf32>
    %cst_78 = arith.constant 0.254829586 : f32
    %152 = vector.broadcast %cst_78 : f32 to vector<16x64xf32>
    %153 = arith.addf %151, %152 : vector<16x64xf32>
    %154 = arith.mulf %153, %140 : vector<16x64xf32>
    %cst_79 = arith.constant 0.000000e+00 : f32
    %155 = vector.broadcast %cst_79 : f32 to vector<16x64xf32>
    %156 = arith.subf %155, %134 : vector<16x64xf32>
    %157 = arith.mulf %156, %134 : vector<16x64xf32>
    %158 = math.exp %157 : vector<16x64xf32>
    %159 = arith.mulf %154, %158 : vector<16x64xf32>
    %cst_80 = arith.constant 1.000000e+00 : f32
    %160 = vector.broadcast %cst_80 : f32 to vector<16x64xf32>
    %161 = arith.subf %160, %159 : vector<16x64xf32>
    %cst_81 = arith.constant 0.000000e+00 : f32
    %162 = vector.broadcast %cst_81 : f32 to vector<16x64xf32>
    %163 = arith.cmpf olt, %133, %162 : vector<16x64xf32>
    %cst_82 = arith.constant 0.000000e+00 : f32
    %164 = vector.broadcast %cst_82 : f32 to vector<16x64xf32>
    %165 = arith.subf %164, %161 : vector<16x64xf32>
    %166 = arith.select %163, %165, %161 : vector<16x64xi1>, vector<16x64xf32>
    %cst_83 = arith.constant 1.000000e+00 : f32
    %167 = vector.broadcast %cst_83 : f32 to vector<16x64xf32>
    %168 = arith.addf %167, %166 : vector<16x64xf32>
    %169 = arith.mulf %131, %168 : vector<16x64xf32>
    %c0_84 = arith.constant 0 : index
    %c0_85 = arith.constant 0 : index
    %c0_86 = arith.constant 0 : index
    %170 = vector.load %arg17[%c0_84, %c0_85, %c0_86] : memref<2x64x32xf32, #tpu.memory_space<vmem>>, vector<1x64x32xf32>
    %171 = vector.shape_cast %170 : vector<1x64x32xf32> to vector<64x32xf32>
    %cst_87 = arith.constant dense<0.000000e+00> : vector<16x32xf32>
    %172 = tpu.matmul %169, %171, %cst_87 {dimension_numbers = #tpu.dot_dimension_numbers<[1], [0], [0], [1], [0, 0, 1, 1], [], []>} : vector<16x64xf32>, vector<64x32xf32>, vector<16x32xf32> -> vector<16x32xf32>
    %173 = arith.addf %96, %172 : vector<16x32xf32>
    %c0_88 = arith.constant 0 : index
    %c0_89 = arith.constant 0 : index
    %c0_90 = arith.constant 0 : index
    %174 = vector.load %arg18[%c0_88, %c0_89, %c0_90] : memref<2x1x32xf32, #tpu.memory_space<vmem>>, vector<1x1x32xf32>
    %175 = vector.shape_cast %174 : vector<1x1x32xf32> to vector<1x32xf32>
    %176 = vector.broadcast %175 : vector<1x32xf32> to vector<16x32xf32>
    %177 = arith.addf %173, %176 : vector<16x32xf32>
    %178 = arith.mulf %177, %177 : vector<16x32xf32>
    %cst_91 = arith.constant dense<0.000000e+00> : vector<16xf32>
    %179 = vector.multi_reduction <add>, %178, %cst_91 [1] : vector<16x32xf32> to vector<16xf32>
    %180 = vector.shape_cast %179 : vector<16xf32> to vector<16x1xf32>
    %cst_92 = arith.constant 3.200000e+01 : f32
    %181 = vector.broadcast %cst_92 : f32 to vector<16x1xf32>
    %182 = arith.divf %180, %181 : vector<16x1xf32>
    %cst_93 = arith.constant 9.99999974E-6 : f32
    %183 = vector.broadcast %cst_93 : f32 to vector<16x1xf32>
    %184 = arith.addf %182, %183 : vector<16x1xf32>
    %185 = math.rsqrt %184 : vector<16x1xf32>
    %186 = vector.broadcast %185 : vector<16x1xf32> to vector<16x32xf32>
    %187 = arith.mulf %177, %186 : vector<16x32xf32>
    %c1 = arith.constant 1 : index
    %c0_94 = arith.constant 0 : index
    %c0_95 = arith.constant 0 : index
    %188 = vector.load %arg1[%c1, %c0_94, %c0_95] : memref<2x1x32xf32, #tpu.memory_space<vmem>>, vector<1x1x32xf32>
    %189 = vector.shape_cast %188 : vector<1x1x32xf32> to vector<1x32xf32>
    %190 = vector.broadcast %189 : vector<1x32xf32> to vector<16x32xf32>
    %191 = arith.mulf %187, %190 : vector<16x32xf32>
    %c1_96 = arith.constant 1 : index
    %c0_97 = arith.constant 0 : index
    %c0_98 = arith.constant 0 : index
    %192 = vector.load %arg3[%c1_96, %c0_97, %c0_98] : memref<2x32x64xf32, #tpu.memory_space<vmem>>, vector<1x32x64xf32>
    %193 = vector.shape_cast %192 : vector<1x32x64xf32> to vector<32x64xf32>
    %cst_99 = arith.constant dense<0.000000e+00> : vector<16x64xf32>
    %194 = tpu.matmul %191, %193, %cst_99 {dimension_numbers = #tpu.dot_dimension_numbers<[1], [0], [0], [1], [0, 0, 1, 1], [], []>} : vector<16x32xf32>, vector<32x64xf32>, vector<16x64xf32> -> vector<16x64xf32>
    %195 = vector.extract_strided_slice %191 {offsets = [0, 0], sizes = [1, 32], strides = [1, 1]} : vector<16x32xf32> to vector<1x32xf32>
    %196 = vector.extract_strided_slice %191 {offsets = [8, 0], sizes = [1, 32], strides = [1, 1]} : vector<16x32xf32> to vector<1x32xf32>
    %197 = tpu.concatenate %195, %196 in 0 : vector<1x32xf32>, vector<1x32xf32> -> vector<2x32xf32>
    %c1_100 = arith.constant 1 : index
    %c0_101 = arith.constant 0 : index
    %c0_102 = arith.constant 0 : index
    %198 = vector.load %arg2[%c1_100, %c0_101, %c0_102] : memref<2x32x64xf32, #tpu.memory_space<vmem>>, vector<1x32x64xf32>
    %199 = vector.shape_cast %198 : vector<1x32x64xf32> to vector<32x64xf32>
    %cst_103 = arith.constant dense<0.000000e+00> : vector<2x64xf32>
    %200 = tpu.matmul %197, %199, %cst_103 {dimension_numbers = #tpu.dot_dimension_numbers<[1], [0], [0], [1], [0, 0, 1, 1], [], []>} : vector<2x32xf32>, vector<32x64xf32>, vector<2x64xf32> -> vector<2x64xf32>
    %c1_104 = arith.constant 1 : index
    %c0_105 = arith.constant 0 : index
    %c0_106 = arith.constant 0 : index
    %201 = vector.load %arg4[%c1_104, %c0_105, %c0_106] : memref<2x1x64xf32, #tpu.memory_space<vmem>>, vector<1x1x64xf32>
    %202 = vector.shape_cast %201 : vector<1x1x64xf32> to vector<1x64xf32>
    %203 = vector.broadcast %202 : vector<1x64xf32> to vector<2x64xf32>
    %204 = arith.mulf %200, %203 : vector<2x64xf32>
    %c1_107 = arith.constant 1 : index
    %c0_108 = arith.constant 0 : index
    %c0_109 = arith.constant 0 : index
    %205 = vector.load %arg5[%c1_107, %c0_108, %c0_109] : memref<2x1x64xf32, #tpu.memory_space<vmem>>, vector<1x1x64xf32>
    %206 = vector.shape_cast %205 : vector<1x1x64xf32> to vector<1x64xf32>
    %207 = vector.broadcast %206 : vector<1x64xf32> to vector<2x64xf32>
    %208 = arith.addf %204, %207 : vector<2x64xf32>
    %209 = arith.negf %208 : vector<2x64xf32>
    %210 = math.exp %209 : vector<2x64xf32>
    %cst_110 = arith.constant 1.000000e+00 : f32
    %211 = vector.broadcast %cst_110 : f32 to vector<2x64xf32>
    %212 = arith.addf %211, %210 : vector<2x64xf32>
    %213 = arith.divf %211, %212 : vector<2x64xf32>
    %214 = arith.mulf %208, %213 : vector<2x64xf32>
    %c1_111 = arith.constant 1 : index
    %c0_112 = arith.constant 0 : index
    %c0_113 = arith.constant 0 : index
    %215 = vector.load %arg6[%c1_111, %c0_112, %c0_113] : memref<2x64x2xf32, #tpu.memory_space<vmem>>, vector<1x64x2xf32>
    %216 = vector.shape_cast %215 : vector<1x64x2xf32> to vector<64x2xf32>
    %cst_114 = arith.constant dense<0.000000e+00> : vector<2x2xf32>
    %217 = tpu.matmul %214, %216, %cst_114 {dimension_numbers = #tpu.dot_dimension_numbers<[1], [0], [0], [1], [0, 0, 1, 1], [], []>} : vector<2x64xf32>, vector<64x2xf32>, vector<2x2xf32> -> vector<2x2xf32>
    %c1_115 = arith.constant 1 : index
    %c0_116 = arith.constant 0 : index
    %c0_117 = arith.constant 0 : index
    %218 = vector.load %arg7[%c1_115, %c0_116, %c0_117] : memref<2x64x16xf32, #tpu.memory_space<vmem>>, vector<1x64x16xf32>
    %219 = vector.shape_cast %218 : vector<1x64x16xf32> to vector<64x16xf32>
    %cst_118 = arith.constant dense<0.000000e+00> : vector<2x16xf32>
    %220 = tpu.matmul %214, %219, %cst_118 {dimension_numbers = #tpu.dot_dimension_numbers<[1], [0], [0], [1], [0, 0, 1, 1], [], []>} : vector<2x64xf32>, vector<64x16xf32>, vector<2x16xf32> -> vector<2x16xf32>
    %c1_119 = arith.constant 1 : index
    %c0_120 = arith.constant 0 : index
    %c0_121 = arith.constant 0 : index
    %221 = vector.load %arg8[%c1_119, %c0_120, %c0_121] : memref<2x64x16xf32, #tpu.memory_space<vmem>>, vector<1x64x16xf32>
    %222 = vector.shape_cast %221 : vector<1x64x16xf32> to vector<64x16xf32>
    %cst_122 = arith.constant dense<0.000000e+00> : vector<2x16xf32>
    %223 = tpu.matmul %214, %222, %cst_122 {dimension_numbers = #tpu.dot_dimension_numbers<[1], [0], [0], [1], [0, 0, 1, 1], [], []>} : vector<2x64xf32>, vector<64x16xf32>, vector<2x16xf32> -> vector<2x16xf32>
    %c1_123 = arith.constant 1 : index
    %c0_124 = arith.constant 0 : index
    %c0_125 = arith.constant 0 : index
    %224 = vector.load %arg9[%c1_123, %c0_124, %c0_125] : memref<2x2x64xf32, #tpu.memory_space<vmem>>, vector<1x2x64xf32>
    %225 = vector.shape_cast %224 : vector<1x2x64xf32> to vector<2x64xf32>
    %cst_126 = arith.constant dense<0.000000e+00> : vector<2x64xf32>
    %226 = tpu.matmul %217, %225, %cst_126 {dimension_numbers = #tpu.dot_dimension_numbers<[1], [0], [0], [1], [0, 0, 1, 1], [], []>} : vector<2x2xf32>, vector<2x64xf32>, vector<2x64xf32> -> vector<2x64xf32>
    %c1_127 = arith.constant 1 : index
    %c0_128 = arith.constant 0 : index
    %c0_129 = arith.constant 0 : index
    %227 = vector.load %arg10[%c1_127, %c0_128, %c0_129] : memref<2x1x64xf32, #tpu.memory_space<vmem>>, vector<1x1x64xf32>
    %228 = vector.shape_cast %227 : vector<1x1x64xf32> to vector<1x64xf32>
    %229 = vector.broadcast %228 : vector<1x64xf32> to vector<2x64xf32>
    %230 = arith.addf %226, %229 : vector<2x64xf32>
    %cst_130 = arith.constant 0.000000e+00 : f32
    %231 = vector.broadcast %cst_130 : f32 to vector<2x64xf32>
    %232 = arith.maximumf %230, %231 : vector<2x64xf32>
    %233 = vector.broadcast %cst_130 : f32 to vector<2x64xf32>
    %234 = arith.subf %230, %233 : vector<2x64xf32>
    %235 = arith.cmpf one, %234, %234 : vector<2x64xf32>
    %236 = vector.broadcast %cst_130 : f32 to vector<2x64xf32>
    %237 = arith.addf %230, %236 : vector<2x64xf32>
    %238 = math.absf %234 : vector<2x64xf32>
    %cst_131 = arith.constant 0.000000e+00 : f32
    %239 = vector.broadcast %cst_131 : f32 to vector<2x64xf32>
    %240 = arith.subf %239, %238 : vector<2x64xf32>
    %241 = math.exp %240 : vector<2x64xf32>
    %242 = math.log1p %241 : vector<2x64xf32>
    %243 = arith.addf %232, %242 : vector<2x64xf32>
    %244 = arith.select %235, %237, %243 : vector<2x64xi1>, vector<2x64xf32>
    %245 = arith.mulf %220, %223 : vector<2x16xf32>
    %cst_132 = arith.constant dense<0.000000e+00> : vector<2xf32>
    %246 = vector.multi_reduction <add>, %245, %cst_132 [1] : vector<2x16xf32> to vector<2xf32>
    %247 = vector.shape_cast %246 : vector<2xf32> to vector<2x1xf32>
    %248 = arith.mulf %244, %214 : vector<2x64xf32>
    %249 = vector.broadcast %247 : vector<2x1xf32> to vector<2x64xf32>
    %250 = arith.mulf %248, %249 : vector<2x64xf32>
    %c1_133 = arith.constant 1 : index
    %c0_134 = arith.constant 0 : index
    %c0_135 = arith.constant 0 : index
    %251 = vector.load %arg11[%c1_133, %c0_134, %c0_135] : memref<2x1x64xf32, #tpu.memory_space<vmem>>, vector<1x1x64xf32>
    %252 = vector.shape_cast %251 : vector<1x1x64xf32> to vector<1x64xf32>
    %253 = vector.broadcast %252 : vector<1x64xf32> to vector<2x64xf32>
    %254 = arith.mulf %214, %253 : vector<2x64xf32>
    %255 = arith.addf %250, %254 : vector<2x64xf32>
    %256 = vector.extract_strided_slice %255 {offsets = [0, 0], sizes = [1, 64], strides = [1, 1]} : vector<2x64xf32> to vector<1x64xf32>
    %257 = vector.shape_cast %256 : vector<1x64xf32> to vector<1x64xf32>
    %258 = vector.broadcast %257 : vector<1x64xf32> to vector<8x64xf32>
    %259 = vector.extract_strided_slice %255 {offsets = [1, 0], sizes = [1, 64], strides = [1, 1]} : vector<2x64xf32> to vector<1x64xf32>
    %260 = vector.shape_cast %259 : vector<1x64xf32> to vector<1x64xf32>
    %261 = vector.broadcast %260 : vector<1x64xf32> to vector<8x64xf32>
    %262 = tpu.concatenate %258, %261 in 0 : vector<8x64xf32>, vector<8x64xf32> -> vector<16x64xf32>
    %263 = arith.negf %194 : vector<16x64xf32>
    %264 = math.exp %263 : vector<16x64xf32>
    %cst_136 = arith.constant 1.000000e+00 : f32
    %265 = vector.broadcast %cst_136 : f32 to vector<16x64xf32>
    %266 = arith.addf %265, %264 : vector<16x64xf32>
    %267 = arith.divf %265, %266 : vector<16x64xf32>
    %268 = arith.mulf %194, %267 : vector<16x64xf32>
    %269 = arith.mulf %262, %268 : vector<16x64xf32>
    %c1_137 = arith.constant 1 : index
    %c0_138 = arith.constant 0 : index
    %c0_139 = arith.constant 0 : index
    %270 = vector.load %arg12[%c1_137, %c0_138, %c0_139] : memref<2x64x32xf32, #tpu.memory_space<vmem>>, vector<1x64x32xf32>
    %271 = vector.shape_cast %270 : vector<1x64x32xf32> to vector<64x32xf32>
    %cst_140 = arith.constant dense<0.000000e+00> : vector<16x32xf32>
    %272 = tpu.matmul %269, %271, %cst_140 {dimension_numbers = #tpu.dot_dimension_numbers<[1], [0], [0], [1], [0, 0, 1, 1], [], []>} : vector<16x64xf32>, vector<64x32xf32>, vector<16x32xf32> -> vector<16x32xf32>
    %273 = arith.addf %177, %272 : vector<16x32xf32>
    %c1_141 = arith.constant 1 : index
    %c0_142 = arith.constant 0 : index
    %c0_143 = arith.constant 0 : index
    %274 = vector.load %arg13[%c1_141, %c0_142, %c0_143] : memref<2x1x32xf32, #tpu.memory_space<vmem>>, vector<1x1x32xf32>
    %275 = vector.shape_cast %274 : vector<1x1x32xf32> to vector<1x32xf32>
    %c1_144 = arith.constant 1 : index
    %c0_145 = arith.constant 0 : index
    %c0_146 = arith.constant 0 : index
    %276 = vector.load %arg14[%c1_144, %c0_145, %c0_146] : memref<2x1x32xf32, #tpu.memory_space<vmem>>, vector<1x1x32xf32>
    %277 = vector.shape_cast %276 : vector<1x1x32xf32> to vector<1x32xf32>
    %cst_147 = arith.constant dense<0.000000e+00> : vector<16xf32>
    %278 = vector.multi_reduction <add>, %273, %cst_147 [1] : vector<16x32xf32> to vector<16xf32>
    %279 = vector.shape_cast %278 : vector<16xf32> to vector<16x1xf32>
    %cst_148 = arith.constant 3.200000e+01 : f32
    %280 = vector.broadcast %cst_148 : f32 to vector<16x1xf32>
    %281 = arith.divf %279, %280 : vector<16x1xf32>
    %282 = vector.broadcast %281 : vector<16x1xf32> to vector<16x32xf32>
    %283 = arith.subf %273, %282 : vector<16x32xf32>
    %284 = arith.mulf %283, %283 : vector<16x32xf32>
    %cst_149 = arith.constant dense<0.000000e+00> : vector<16xf32>
    %285 = vector.multi_reduction <add>, %284, %cst_149 [1] : vector<16x32xf32> to vector<16xf32>
    %286 = vector.shape_cast %285 : vector<16xf32> to vector<16x1xf32>
    %cst_150 = arith.constant 3.200000e+01 : f32
    %287 = vector.broadcast %cst_150 : f32 to vector<16x1xf32>
    %288 = arith.divf %286, %287 : vector<16x1xf32>
    %289 = vector.broadcast %281 : vector<16x1xf32> to vector<16x32xf32>
    %290 = arith.subf %273, %289 : vector<16x32xf32>
    %cst_151 = arith.constant 9.99999974E-6 : f32
    %291 = vector.broadcast %cst_151 : f32 to vector<16x1xf32>
    %292 = arith.addf %288, %291 : vector<16x1xf32>
    %293 = math.rsqrt %292 : vector<16x1xf32>
    %294 = vector.broadcast %293 : vector<16x1xf32> to vector<16x32xf32>
    %295 = arith.mulf %290, %294 : vector<16x32xf32>
    %296 = vector.broadcast %275 : vector<1x32xf32> to vector<16x32xf32>
    %297 = arith.mulf %295, %296 : vector<16x32xf32>
    %298 = vector.broadcast %277 : vector<1x32xf32> to vector<16x32xf32>
    %299 = arith.addf %297, %298 : vector<16x32xf32>
    %c1_152 = arith.constant 1 : index
    %c0_153 = arith.constant 0 : index
    %c0_154 = arith.constant 0 : index
    %300 = vector.load %arg15[%c1_152, %c0_153, %c0_154] : memref<2x32x64xf32, #tpu.memory_space<vmem>>, vector<1x32x64xf32>
    %301 = vector.shape_cast %300 : vector<1x32x64xf32> to vector<32x64xf32>
    %cst_155 = arith.constant dense<0.000000e+00> : vector<16x64xf32>
    %302 = tpu.matmul %299, %301, %cst_155 {dimension_numbers = #tpu.dot_dimension_numbers<[1], [0], [0], [1], [0, 0, 1, 1], [], []>} : vector<16x32xf32>, vector<32x64xf32>, vector<16x64xf32> -> vector<16x64xf32>
    %c1_156 = arith.constant 1 : index
    %c0_157 = arith.constant 0 : index
    %c0_158 = arith.constant 0 : index
    %303 = vector.load %arg16[%c1_156, %c0_157, %c0_158] : memref<2x1x64xf32, #tpu.memory_space<vmem>>, vector<1x1x64xf32>
    %304 = vector.shape_cast %303 : vector<1x1x64xf32> to vector<1x64xf32>
    %305 = vector.broadcast %304 : vector<1x64xf32> to vector<16x64xf32>
    %306 = arith.addf %302, %305 : vector<16x64xf32>
    %cst_159 = arith.constant 5.000000e-01 : f32
    %307 = vector.broadcast %cst_159 : f32 to vector<16x64xf32>
    %308 = arith.mulf %307, %306 : vector<16x64xf32>
    %cst_160 = arith.constant 0.707106769 : f32
    %309 = vector.broadcast %cst_160 : f32 to vector<16x64xf32>
    %310 = arith.mulf %306, %309 : vector<16x64xf32>
    %311 = math.absf %310 : vector<16x64xf32>
    %cst_161 = arith.constant 0.327591091 : f32
    %312 = vector.broadcast %cst_161 : f32 to vector<16x64xf32>
    %313 = arith.mulf %312, %311 : vector<16x64xf32>
    %cst_162 = arith.constant 1.000000e+00 : f32
    %314 = vector.broadcast %cst_162 : f32 to vector<16x64xf32>
    %315 = arith.addf %314, %313 : vector<16x64xf32>
    %cst_163 = arith.constant 1.000000e+00 : f32
    %316 = vector.broadcast %cst_163 : f32 to vector<16x64xf32>
    %317 = arith.divf %316, %315 : vector<16x64xf32>
    %cst_164 = arith.constant 1.06140542 : f32
    %318 = vector.broadcast %cst_164 : f32 to vector<16x64xf32>
    %319 = arith.mulf %318, %317 : vector<16x64xf32>
    %cst_165 = arith.constant -1.45315206 : f32
    %320 = vector.broadcast %cst_165 : f32 to vector<16x64xf32>
    %321 = arith.addf %319, %320 : vector<16x64xf32>
    %322 = arith.mulf %321, %317 : vector<16x64xf32>
    %cst_166 = arith.constant 1.42141378 : f32
    %323 = vector.broadcast %cst_166 : f32 to vector<16x64xf32>
    %324 = arith.addf %322, %323 : vector<16x64xf32>
    %325 = arith.mulf %324, %317 : vector<16x64xf32>
    %cst_167 = arith.constant -0.284496725 : f32
    %326 = vector.broadcast %cst_167 : f32 to vector<16x64xf32>
    %327 = arith.addf %325, %326 : vector<16x64xf32>
    %328 = arith.mulf %327, %317 : vector<16x64xf32>
    %cst_168 = arith.constant 0.254829586 : f32
    %329 = vector.broadcast %cst_168 : f32 to vector<16x64xf32>
    %330 = arith.addf %328, %329 : vector<16x64xf32>
    %331 = arith.mulf %330, %317 : vector<16x64xf32>
    %cst_169 = arith.constant 0.000000e+00 : f32
    %332 = vector.broadcast %cst_169 : f32 to vector<16x64xf32>
    %333 = arith.subf %332, %311 : vector<16x64xf32>
    %334 = arith.mulf %333, %311 : vector<16x64xf32>
    %335 = math.exp %334 : vector<16x64xf32>
    %336 = arith.mulf %331, %335 : vector<16x64xf32>
    %cst_170 = arith.constant 1.000000e+00 : f32
    %337 = vector.broadcast %cst_170 : f32 to vector<16x64xf32>
    %338 = arith.subf %337, %336 : vector<16x64xf32>
    %cst_171 = arith.constant 0.000000e+00 : f32
    %339 = vector.broadcast %cst_171 : f32 to vector<16x64xf32>
    %340 = arith.cmpf olt, %310, %339 : vector<16x64xf32>
    %cst_172 = arith.constant 0.000000e+00 : f32
    %341 = vector.broadcast %cst_172 : f32 to vector<16x64xf32>
    %342 = arith.subf %341, %338 : vector<16x64xf32>
    %343 = arith.select %340, %342, %338 : vector<16x64xi1>, vector<16x64xf32>
    %cst_173 = arith.constant 1.000000e+00 : f32
    %344 = vector.broadcast %cst_173 : f32 to vector<16x64xf32>
    %345 = arith.addf %344, %343 : vector<16x64xf32>
    %346 = arith.mulf %308, %345 : vector<16x64xf32>
    %c1_174 = arith.constant 1 : index
    %c0_175 = arith.constant 0 : index
    %c0_176 = arith.constant 0 : index
    %347 = vector.load %arg17[%c1_174, %c0_175, %c0_176] : memref<2x64x32xf32, #tpu.memory_space<vmem>>, vector<1x64x32xf32>
    %348 = vector.shape_cast %347 : vector<1x64x32xf32> to vector<64x32xf32>
    %cst_177 = arith.constant dense<0.000000e+00> : vector<16x32xf32>
    %349 = tpu.matmul %346, %348, %cst_177 {dimension_numbers = #tpu.dot_dimension_numbers<[1], [0], [0], [1], [0, 0, 1, 1], [], []>} : vector<16x64xf32>, vector<64x32xf32>, vector<16x32xf32> -> vector<16x32xf32>
    %350 = arith.addf %273, %349 : vector<16x32xf32>
    %c1_178 = arith.constant 1 : index
    %c0_179 = arith.constant 0 : index
    %c0_180 = arith.constant 0 : index
    %351 = vector.load %arg18[%c1_178, %c0_179, %c0_180] : memref<2x1x32xf32, #tpu.memory_space<vmem>>, vector<1x1x32xf32>
    %352 = vector.shape_cast %351 : vector<1x1x32xf32> to vector<1x32xf32>
    %353 = vector.broadcast %352 : vector<1x32xf32> to vector<16x32xf32>
    %354 = arith.addf %350, %353 : vector<16x32xf32>
    %c0_181 = arith.constant 0 : index
    %c0_182 = arith.constant 0 : index
    %355 = vector.load %arg19[%c0_181, %c0_182] : memref<1x32xf32, #tpu.memory_space<vmem>>, vector<1x32xf32>
    %c0_183 = arith.constant 0 : index
    %c0_184 = arith.constant 0 : index
    %356 = vector.load %arg20[%c0_183, %c0_184] : memref<1x32xf32, #tpu.memory_space<vmem>>, vector<1x32xf32>
    %cst_185 = arith.constant dense<0.000000e+00> : vector<16xf32>
    %357 = vector.multi_reduction <add>, %354, %cst_185 [1] : vector<16x32xf32> to vector<16xf32>
    %358 = vector.shape_cast %357 : vector<16xf32> to vector<16x1xf32>
    %cst_186 = arith.constant 3.200000e+01 : f32
    %359 = vector.broadcast %cst_186 : f32 to vector<16x1xf32>
    %360 = arith.divf %358, %359 : vector<16x1xf32>
    %361 = vector.broadcast %360 : vector<16x1xf32> to vector<16x32xf32>
    %362 = arith.subf %354, %361 : vector<16x32xf32>
    %363 = arith.mulf %362, %362 : vector<16x32xf32>
    %cst_187 = arith.constant dense<0.000000e+00> : vector<16xf32>
    %364 = vector.multi_reduction <add>, %363, %cst_187 [1] : vector<16x32xf32> to vector<16xf32>
    %365 = vector.shape_cast %364 : vector<16xf32> to vector<16x1xf32>
    %cst_188 = arith.constant 3.200000e+01 : f32
    %366 = vector.broadcast %cst_188 : f32 to vector<16x1xf32>
    %367 = arith.divf %365, %366 : vector<16x1xf32>
    %368 = vector.broadcast %360 : vector<16x1xf32> to vector<16x32xf32>
    %369 = arith.subf %354, %368 : vector<16x32xf32>
    %cst_189 = arith.constant 9.99999974E-6 : f32
    %370 = vector.broadcast %cst_189 : f32 to vector<16x1xf32>
    %371 = arith.addf %367, %370 : vector<16x1xf32>
    %372 = math.rsqrt %371 : vector<16x1xf32>
    %373 = vector.broadcast %372 : vector<16x1xf32> to vector<16x32xf32>
    %374 = arith.mulf %369, %373 : vector<16x32xf32>
    %375 = vector.broadcast %355 : vector<1x32xf32> to vector<16x32xf32>
    %376 = arith.mulf %374, %375 : vector<16x32xf32>
    %377 = vector.broadcast %356 : vector<1x32xf32> to vector<16x32xf32>
    %378 = arith.addf %376, %377 : vector<16x32xf32>
    %c0_190 = arith.constant 0 : index
    %c0_191 = arith.constant 0 : index
    %379 = vector.load %arg21[%c0_190, %c0_191] : memref<16x32xf32, #tpu.memory_space<vmem>>, vector<16x32xf32>
    tpu.vector_store %arg21[%c0_190, %c0_191], %378 {strides = array<i32>} : memref<16x32xf32, #tpu.memory_space<vmem>>, vector<16x32xf32>,
    return
  }
}

</mosaic_0001>

<llo_original>
// kernel: tpu_custom_call.1
$region0: #{tpu_custom_call.1}
  #allocation0 [shape = 'u32[]', space=smem, size = 0x4, offset = 0x4, fixed_abs, tag = 'smem constant byte address 0x4 - core index']
  #allocation1 [shape = 'u32[144,128]{1,0:T(1,128)}', space=vmem, size = 0x12000, scoped, tag = 'internal scratch']
  %s0 = inlined_call_operand.vmem [shape: f32[16,32], index: 0, kind: input, shape index: {}]
  %s1 = inlined_call_operand.vmem [shape: f32[2,1,32], index: 1, kind: input, shape index: {}]
  %s2 = inlined_call_operand.vmem [shape: f32[2,32,64], index: 2, kind: input, shape index: {}]
  %s3 = inlined_call_operand.vmem [shape: f32[2,32,64], index: 3, kind: input, shape index: {}]
  %s4 = inlined_call_operand.vmem [shape: f32[2,1,64], index: 4, kind: input, shape index: {}]
  %s5 = inlined_call_operand.vmem [shape: f32[2,1,64], index: 5, kind: input, shape index: {}]
  %s6 = inlined_call_operand.vmem [shape: f32[2,64,2], index: 6, kind: input, shape index: {}]
  %s7 = inlined_call_operand.vmem [shape: f32[2,64,16], index: 7, kind: input, shape index: {}]
  %s8 = inlined_call_operand.vmem [shape: f32[2,64,16], index: 8, kind: input, shape index: {}]
  %s9 = inlined_call_operand.vmem [shape: f32[2,2,64], index: 9, kind: input, shape index: {}]
  %s10 = inlined_call_operand.vmem [shape: f32[2,1,64], index: 10, kind: input, shape index: {}]
  %s11 = inlined_call_operand.vmem [shape: f32[2,1,64], index: 11, kind: input, shape index: {}]
  %s12 = inlined_call_operand.vmem [shape: f32[2,64,32], index: 12, kind: input, shape index: {}]
  %s13 = inlined_call_operand.vmem [shape: f32[2,1,32], index: 13, kind: input, shape index: {}]
  %s14 = inlined_call_operand.vmem [shape: f32[2,1,32], index: 14, kind: input, shape index: {}]
  %s15 = inlined_call_operand.vmem [shape: f32[2,32,64], index: 15, kind: input, shape index: {}]
  %s16 = inlined_call_operand.vmem [shape: f32[2,1,64], index: 16, kind: input, shape index: {}]
  %s17 = inlined_call_operand.vmem [shape: f32[2,64,32], index: 17, kind: input, shape index: {}]
  %s18 = inlined_call_operand.vmem [shape: f32[2,1,32], index: 18, kind: input, shape index: {}]
  %s19 = inlined_call_operand.vmem [shape: f32[1,32], index: 19, kind: input, shape index: {}]
  %s20 = inlined_call_operand.vmem [shape: f32[1,32], index: 20, kind: input, shape index: {}]
  %s21 = inlined_call_operand.hbm [shape: f32[16,32], index: 21, kind: output, shape index: {}]
  %s22 = sld [smem:[#allocation0]]
  $region94: #{tpu_custom_call.1} parent=0
    _
  %s24 = ssub.s32 1, %s22
  %s25 = scalar_select 0, %s24, %s22
  $region1: #{tpu_custom_call.1} parent=0
    #allocation2 [shape = 'u8[8192]{0}', space=vmem, size = 0x2000, scoped, tag = 'output window, operand 0, single buffered']
    #allocation3 [shape = 's32[1]{0}', space=sflag, size = 0x4, scoped, tag = 'scoped memory for tpu_custom_call.1']
    %26 = vsyncpa [#allocation3], 0
    // Predicated region
    $region2: #{tpu_custom_call.1} parent=1 // pred_check
      _
    $region3: #{tpu_custom_call.1} parent=1 // pred_check_branch
      %28 = sbr.rel (0) target = $region5
    $region4: #{tpu_custom_call.1} parent=1 // pred_region
      _
    $region5: #{tpu_custom_call.1} parent=1 // pred_fallthru
      _
    // Predicated region
    $region6: #{tpu_custom_call.1} parent=1 // pred_check
      _
    $region7: #{tpu_custom_call.1} parent=1 // pred_check_branch
      %30 = sbr.rel (0) target = $region9
    $region8: #{tpu_custom_call.1} parent=1 // pred_region
      _
    $region9: #{tpu_custom_call.1} parent=1 // pred_fallthru
      _
    // Predicated region
    $region10: #{tpu_custom_call.1} parent=1 // pred_check
      _
    $region11: #{tpu_custom_call.1} parent=1 // pred_check_branch
      %32 = sbr.rel (0) target = $region13
    $region12: #{tpu_custom_call.1} parent=1 // pred_region
      _
    $region13: #{tpu_custom_call.1} parent=1 // pred_fallthru
      _
    // Predicated region
    $region14: #{tpu_custom_call.1} parent=1 // pred_check
      _
    $region15: #{tpu_custom_call.1} parent=1 // pred_check_branch
      %34 = sbr.rel (0) target = $region17
    $region16: #{tpu_custom_call.1} parent=1 // pred_region
      _
    $region17: #{tpu_custom_call.1} parent=1 // pred_fallthru
      _
    // Predicated region
    $region18: #{tpu_custom_call.1} parent=1 // pred_check
      _
    $region19: #{tpu_custom_call.1} parent=1 // pred_check_branch
      %36 = sbr.rel (0) target = $region21
    $region20: #{tpu_custom_call.1} parent=1 // pred_region
      _
    $region21: #{tpu_custom_call.1} parent=1 // pred_fallthru
      _
    // Predicated region
    $region22: #{tpu_custom_call.1} parent=1 // pred_check
      _
    $region23: #{tpu_custom_call.1} parent=1 // pred_check_branch
      %38 = sbr.rel (0) target = $region25
    $region24: #{tpu_custom_call.1} parent=1 // pred_region
      _
    $region25: #{tpu_custom_call.1} parent=1 // pred_fallthru
      _
    // Predicated region
    $region26: #{tpu_custom_call.1} parent=1 // pred_check
      _
    $region27: #{tpu_custom_call.1} parent=1 // pred_check_branch
      %40 = sbr.rel (0) target = $region29
    $region28: #{tpu_custom_call.1} parent=1 // pred_region
      _
    $region29: #{tpu_custom_call.1} parent=1 // pred_fallthru
      _
    // Predicated region
    $region30: #{tpu_custom_call.1} parent=1 // pred_check
      _
    $region31: #{tpu_custom_call.1} parent=1 // pred_check_branch
      %42 = sbr.rel (0) target = $region33
    $region32: #{tpu_custom_call.1} parent=1 // pred_region
      _
    $region33: #{tpu_custom_call.1} parent=1 // pred_fallthru
      _
    // Predicated region
    $region34: #{tpu_custom_call.1} parent=1 // pred_check
      _
    $region35: #{tpu_custom_call.1} parent=1 // pred_check_branch
      %44 = sbr.rel (0) target = $region37
    $region36: #{tpu_custom_call.1} parent=1 // pred_region
      _
    $region37: #{tpu_custom_call.1} parent=1 // pred_fallthru
      _
    // Predicated region
    $region38: #{tpu_custom_call.1} parent=1 // pred_check
      _
    $region39: #{tpu_custom_call.1} parent=1 // pred_check_branch
      %46 = sbr.rel (0) target = $region41
    $region40: #{tpu_custom_call.1} parent=1 // pred_region
      _
    $region41: #{tpu_custom_call.1} parent=1 // pred_fallthru
      _
    // Predicated region
    $region42: #{tpu_custom_call.1} parent=1 // pred_check
      _
    $region43: #{tpu_custom_call.1} parent=1 // pred_check_branch
      %48 = sbr.rel (0) target = $region45
    $region44: #{tpu_custom_call.1} parent=1 // pred_region
      _
    $region45: #{tpu_custom_call.1} parent=1 // pred_fallthru
      _
    // Predicated region
    $region46: #{tpu_custom_call.1} parent=1 // pred_check
      _
    $region47: #{tpu_custom_call.1} parent=1 // pred_check_branch
      %50 = sbr.rel (0) target = $region49
    $region48: #{tpu_custom_call.1} parent=1 // pred_region
      _
    $region49: #{tpu_custom_call.1} parent=1 // pred_fallthru
      _
    // Predicated region
    $region50: #{tpu_custom_call.1} parent=1 // pred_check
      _
    $region51: #{tpu_custom_call.1} parent=1 // pred_check_branch
      %52 = sbr.rel (0) target = $region53
    $region52: #{tpu_custom_call.1} parent=1 // pred_region
      _
    $region53: #{tpu_custom_call.1} parent=1 // pred_fallthru
      _
    // Predicated region
    $region54: #{tpu_custom_call.1} parent=1 // pred_check
      _
    $region55: #{tpu_custom_call.1} parent=1 // pred_check_branch
      %54 = sbr.rel (0) target = $region57
    $region56: #{tpu_custom_call.1} parent=1 // pred_region
      _
    $region57: #{tpu_custom_call.1} parent=1 // pred_fallthru
      _
    // Predicated region
    $region58: #{tpu_custom_call.1} parent=1 // pred_check
      _
    $region59: #{tpu_custom_call.1} parent=1 // pred_check_branch
      %56 = sbr.rel (0) target = $region61
    $region60: #{tpu_custom_call.1} parent=1 // pred_region
      _
    $region61: #{tpu_custom_call.1} parent=1 // pred_fallthru
      _
    // Predicated region
    $region62: #{tpu_custom_call.1} parent=1 // pred_check
      _
    $region63: #{tpu_custom_call.1} parent=1 // pred_check_branch
      %58 = sbr.rel (0) target = $region65
    $region64: #{tpu_custom_call.1} parent=1 // pred_region
      _
    $region65: #{tpu_custom_call.1} parent=1 // pred_fallthru
      _
    // Predicated region
    $region66: #{tpu_custom_call.1} parent=1 // pred_check
      _
    $region67: #{tpu_custom_call.1} parent=1 // pred_check_branch
      %60 = sbr.rel (0) target = $region69
    $region68: #{tpu_custom_call.1} parent=1 // pred_region
      _
    $region69: #{tpu_custom_call.1} parent=1 // pred_fallthru
      _
    // Predicated region
    $region70: #{tpu_custom_call.1} parent=1 // pred_check
      _
    $region71: #{tpu_custom_call.1} parent=1 // pred_check_branch
      %62 = sbr.rel (0) target = $region73
    $region72: #{tpu_custom_call.1} parent=1 // pred_region
      _
    $region73: #{tpu_custom_call.1} parent=1 // pred_fallthru
      _
    // Predicated region
    $region74: #{tpu_custom_call.1} parent=1 // pred_check
      _
    $region75: #{tpu_custom_call.1} parent=1 // pred_check_branch
      %64 = sbr.rel (0) target = $region77
    $region76: #{tpu_custom_call.1} parent=1 // pred_region
      _
    $region77: #{tpu_custom_call.1} parent=1 // pred_fallthru
      _
    // Predicated region
    $region78: #{tpu_custom_call.1} parent=1 // pred_check
      _
    $region79: #{tpu_custom_call.1} parent=1 // pred_check_branch
      %66 = sbr.rel (0) target = $region81
    $region80: #{tpu_custom_call.1} parent=1 // pred_region
      _
    $region81: #{tpu_custom_call.1} parent=1 // pred_fallthru
      _
    // Predicated region
    $region82: #{tpu_custom_call.1} parent=1 // pred_check
      _
    $region83: #{tpu_custom_call.1} parent=1 // pred_check_branch
      %68 = sbr.rel (0) target = $region85
    $region84: #{tpu_custom_call.1} parent=1 // pred_region
      _
    $region85: #{tpu_custom_call.1} parent=1 // pred_fallthru
      _
    %v69 = vld [vmem:[%s0] sm:$0xff]
    %v70 = vld [vmem:[%s0 + $0x8] sm:$0xff]
    %v71 = vmul.f32 %v69, %v69
    %v72 = vmul.f32 %v70, %v70
    %vm73 = vcmask 261120
    %v74 = vsel %vm73, %v71, 0.0
    %75 = vadd.xlane.f32.xlu0 %v74
    %v76 = vpop.xlane.xlu0 %75
    %v77 = vsel %vm73, %v72, 0.0
    %78 = vadd.xlane.f32.xlu0 %v77
    %v79 = vpop.xlane.xlu0 %78
    %v80 = vrcp.pop 32.0
    %v81 = vmul.f32 %v76, %v80
    %v82 = vmul.f32 %v79, %v80
    %v83 = vadd.f32 %v81, 1e-05
    %v84 = vadd.f32 %v82, 1e-05
    %v85 = vrsqrt.pop %v83
    %v86 = vrsqrt.pop %v84
    %v87 = vmul.f32 %v69, %v85
    %v88 = vmul.f32 %v70, %v86
    %v89 = vld [vmem:[%s1] sm:$0x1]
    %v91 = vlaneseq
    %v92 = vshrl.u32 %v91, 7
    %v93 = vsub.s32 0, %v92
    %v94 = vrot.slane %v89, %v93
    %v96 = vmul.f32 %v87, %v94
    %v97 = vmul.f32 %v88, %v94
    %v98 = vld [vmem:[%s3] sm:$0xff]
    %v99 = vld [vmem:[%s3 + $0x8] sm:$0xff]
    %v100 = vld [vmem:[%s3 + $0x10] sm:$0xff]
    %v101 = vld [vmem:[%s3 + $0x18] sm:$0xff]
    %v103 = vsel %vm73, %v96, 0
    %v106 = vsel %vm73, %v97, 0
    %108 = vmatprep.subr.mxu0 0.0
    %109 = vmatpush1.msra.mxu0 0.0
    %110 = vmatprep.subr.mxu0 0.0
    %111 = vmatpush1.msra.mxu0 0.0
    %112 = vmatprep.subr.mxu0 0.0
    %113 = vmatpush1.msra.mxu0 0.0
    %114 = vmatprep.subr.mxu0 0.0
    %115 = vmatpush1.msra.mxu0 0.0
    %116 = vmatprep.subr.mxu0 0.0
    %117 = vmatpush1.msra.mxu0 0.0
    %118 = vmatprep.subr.mxu0 0.0
    %119 = vmatpush1.msra.mxu0 0.0
    %120 = vmatprep.subr.mxu0 0.0
    %121 = vmatpush1.msra.mxu0 0.0
    %122 = vmatprep.subr.mxu0 0.0
    %123 = vmatpush1.msra.mxu0 0.0
    %124 = vmatprep.subr.mxu0 0.0
    %125 = vmatpush1.msra.mxu0 0.0
    %126 = vmatprep.subr.mxu0 0.0
    %127 = vmatpush1.msra.mxu0 0.0
    %128 = vmatprep.subr.mxu0 0.0
    %129 = vmatpush1.msra.mxu0 0.0
    %130 = vmatprep.subr.mxu0 0.0
    %131 = vmatpush1.msra.mxu0 0.0
    %132 = vmatprep.subr.mxu0 0.0
    %133 = vmatpush1.msra.mxu0 %v101
    %134 = vmatprep.subr.mxu0 0.0
    %135 = vmatpush1.msra.mxu0 %v100
    %136 = vmatprep.subr.mxu0 0.0
    %137 = vmatpush1.msra.mxu0 %v99
    %138 = vmatprep.subr.mxu0 0.0
    %139 = vmatpush1.msra.mxu0 %v98
    %140 = vmatprep.subr.mxu0 0.0
    %141 = vmatpush2.msra.mxu0 0.0
    %142 = vmatprep.subr.mxu0 0.0
    %143 = vmatpush2.msra.mxu0 0.0
    %144 = vmatprep.subr.mxu0 0.0
    %145 = vmatpush2.msra.mxu0 0.0
    %146 = vmatprep.subr.mxu0 0.0
    %147 = vmatpush2.msra.mxu0 0.0
    %148 = vmatprep.subr.mxu0 0.0
    %149 = vmatpush2.msra.mxu0 0.0
    %150 = vmatprep.subr.mxu0 0.0
    %151 = vmatpush2.msra.mxu0 0.0
    %152 = vmatprep.subr.mxu0 0.0
    %153 = vmatpush2.msra.mxu0 0.0
    %154 = vmatprep.subr.mxu0 0.0
    %155 = vmatpush2.msra.mxu0 0.0
    %156 = vmatprep.subr.mxu0 0.0
    %157 = vmatpush2.msra.mxu0 0.0
    %158 = vmatprep.subr.mxu0 0.0
    %159 = vmatpush2.msra.mxu0 0.0
    %160 = vmatprep.subr.mxu0 0.0
    %161 = vmatpush2.msra.mxu0 0.0
    %162 = vmatprep.subr.mxu0 0.0
    %163 = vmatpush2.msra.mxu0 0.0
    %164 = vmatprep.subr.mxu0 0.0
    %165 = vmatpush2.msra.mxu0 0.0
    %166 = vmatprep.subr.mxu0 0.0
    %167 = vmatpush2.msra.mxu0 0.0
    %168 = vmatprep.subr.mxu0 0.0
    %169 = vmatpush2.msra.mxu0 0.0
    %170 = vmatprep.subr.mxu0 0.0
    %171 = vmatpush2.msra.mxu0 0.0
    %172 = vmatprep.mubr.f32.mxu0 0.0
    %173 = vmatmul.mubr.f32.gmra.mxu0 %v103
    %v174 = vpop.f32.mrf.mxu0
    %v175 = vadd.f32 0.0, %v174
    %v176 = vpop.f32.mrf.mxu0
    %177 = vmatprep.mubr.f32.mxu0 0.0
    %178 = vmatmul.mubr.f32.gmra.mxu0 %v106
    %v179 = vpop.f32.mrf.mxu0
    %v180 = vadd.f32 0.0, %v179
    %v181 = vpop.f32.mrf.mxu0
    %182 = vdwg.mxu0
    %v183 = vrot.slane %v97, 7
    %vm185 = vcmask 1040384
    %v186 = vsel %vm185, %v96, %v183
    %v187 = vld [vmem:[%s2] sm:$0xff]
    %v188 = vld [vmem:[%s2 + $0x8] sm:$0xff]
    %v189 = vld [vmem:[%s2 + $0x10] sm:$0xff]
    %v190 = vld [vmem:[%s2 + $0x18] sm:$0xff]
    %v192 = vsel %vm73, %v186, 0
    %194 = vmatprep.subr.mxu0 0.0
    %195 = vmatpush1.msra.mxu0 0.0
    %196 = vmatprep.subr.mxu0 0.0
    %197 = vmatpush1.msra.mxu0 0.0
    %198 = vmatprep.subr.mxu0 0.0
    %199 = vmatpush1.msra.mxu0 0.0
    %200 = vmatprep.subr.mxu0 0.0
    %201 = vmatpush1.msra.mxu0 0.0
    %202 = vmatprep.subr.mxu0 0.0
    %203 = vmatpush1.msra.mxu0 0.0
    %204 = vmatprep.subr.mxu0 0.0
    %205 = vmatpush1.msra.mxu0 0.0
    %206 = vmatprep.subr.mxu0 0.0
    %207 = vmatpush1.msra.mxu0 0.0
    %208 = vmatprep.subr.mxu0 0.0
    %209 = vmatpush1.msra.mxu0 0.0
    %210 = vmatprep.subr.mxu0 0.0
    %211 = vmatpush1.msra.mxu0 0.0
    %212 = vmatprep.subr.mxu0 0.0
    %213 = vmatpush1.msra.mxu0 0.0
    %214 = vmatprep.subr.mxu0 0.0
    %215 = vmatpush1.msra.mxu0 0.0
    %216 = vmatprep.subr.mxu0 0.0
    %217 = vmatpush1.msra.mxu0 0.0
    %218 = vmatprep.subr.mxu0 0.0
    %219 = vmatpush1.msra.mxu0 %v190
    %220 = vmatprep.subr.mxu0 0.0
    %221 = vmatpush1.msra.mxu0 %v189
    %222 = vmatprep.subr.mxu0 0.0
    %223 = vmatpush1.msra.mxu0 %v188
    %224 = vmatprep.subr.mxu0 0.0
    %225 = vmatpush1.msra.mxu0 %v187
    %226 = vmatprep.subr.mxu0 0.0
    %227 = vmatpush2.msra.mxu0 0.0
    %228 = vmatprep.subr.mxu0 0.0
    %229 = vmatpush2.msra.mxu0 0.0
    %230 = vmatprep.subr.mxu0 0.0
    %231 = vmatpush2.msra.mxu0 0.0
    %232 = vmatprep.subr.mxu0 0.0
    %233 = vmatpush2.msra.mxu0 0.0
    %234 = vmatprep.subr.mxu0 0.0
    %235 = vmatpush2.msra.mxu0 0.0
    %236 = vmatprep.subr.mxu0 0.0
    %237 = vmatpush2.msra.mxu0 0.0
    %238 = vmatprep.subr.mxu0 0.0
    %239 = vmatpush2.msra.mxu0 0.0
    %240 = vmatprep.subr.mxu0 0.0
    %241 = vmatpush2.msra.mxu0 0.0
    %242 = vmatprep.subr.mxu0 0.0
    %243 = vmatpush2.msra.mxu0 0.0
    %244 = vmatprep.subr.mxu0 0.0
    %245 = vmatpush2.msra.mxu0 0.0
    %246 = vmatprep.subr.mxu0 0.0
    %247 = vmatpush2.msra.mxu0 0.0
    %248 = vmatprep.subr.mxu0 0.0
    %249 = vmatpush2.msra.mxu0 0.0
    %250 = vmatprep.subr.mxu0 0.0
    %251 = vmatpush2.msra.mxu0 0.0
    %252 = vmatprep.subr.mxu0 0.0
    %253 = vmatpush2.msra.mxu0 0.0
    %254 = vmatprep.subr.mxu0 0.0
    %255 = vmatpush2.msra.mxu0 0.0
    %256 = vmatprep.subr.mxu0 0.0
    %257 = vmatpush2.msra.mxu0 0.0
    %258 = vmatprep.mubr.f32.mxu0 0.0
    %259 = vmatmul.mubr.f32.gmra.mxu0 %v192
    %v260 = vpop.f32.mrf.mxu0
    %v261 = vadd.f32 0.0, %v260
    %v262 = vpop.f32.mrf.mxu0
    %263 = vdwg.mxu0
    %v264 = vld [vmem:[%s4] sm:$0x1]
    %v266 = vlaneseq
    %v267 = vshrl.u32 %v266, 7
    %v268 = vsub.s32 0, %v267
    %v269 = vrot.slane %v264, %v268
    %v271 = vmul.f32 %v261, %v269
    %v272 = vld [vmem:[%s5] sm:$0x1]
    %v274 = vlaneseq
    %v275 = vshrl.u32 %v274, 7
    %v276 = vsub.s32 0, %v275
    %v277 = vrot.slane %v272, %v276
    %v279 = vadd.f32 %v271, %v277
    %v280 = vxor.u32 %v279, 2147483648
    %v281 = vmul.f32 %v280, 1.442695
    %v282 = vpow.pop %v281
    %v283 = vadd.f32 %v282, 1.0
    %v284 = vrcp.pop %v283
    %v285 = vmul.f32 1.0, %v284
    %v286 = vmul.f32 %v279, %v285
    %v287 = vld [vmem:[%s6] sm:$0xff]
    %v288 = vld [vmem:[%s6 + $0x8] sm:$0xff]
    %v289 = vld [vmem:[%s6 + $0x10] sm:$0xff]
    %v290 = vld [vmem:[%s6 + $0x18] sm:$0xff]
    %v291 = vld [vmem:[%s6 + $0x20] sm:$0xff]
    %v292 = vld [vmem:[%s6 + $0x28] sm:$0xff]
    %v293 = vld [vmem:[%s6 + $0x30] sm:$0xff]
    %v294 = vld [vmem:[%s6 + $0x38] sm:$0xff]
    %vm295 = vcmask 523264
    %v297 = vsel %vm295, %v286, 0
    %299 = vmatprep.subr.mxu0 0.0
    %300 = vmatpush1.msra.mxu0 0.0
    %301 = vmatprep.subr.mxu0 0.0
    %302 = vmatpush1.msra.mxu0 0.0
    %303 = vmatprep.subr.mxu0 0.0
    %304 = vmatpush1.msra.mxu0 0.0
    %305 = vmatprep.subr.mxu0 0.0
    %306 = vmatpush1.msra.mxu0 0.0
    %307 = vmatprep.subr.mxu0 0.0
    %308 = vmatpush1.msra.mxu0 0.0
    %309 = vmatprep.subr.mxu0 0.0
    %310 = vmatpush1.msra.mxu0 0.0
    %311 = vmatprep.subr.mxu0 0.0
    %312 = vmatpush1.msra.mxu0 0.0
    %313 = vmatprep.subr.mxu0 0.0
    %314 = vmatpush1.msra.mxu0 0.0
    %315 = vmatprep.subr.mxu0 0.0
    %316 = vmatpush1.msra.mxu0 %v294
    %317 = vmatprep.subr.mxu0 0.0
    %318 = vmatpush1.msra.mxu0 %v293
    %319 = vmatprep.subr.mxu0 0.0
    %320 = vmatpush1.msra.mxu0 %v292
    %321 = vmatprep.subr.mxu0 0.0
    %322 = vmatpush1.msra.mxu0 %v291
    %323 = vmatprep.subr.mxu0 0.0
    %324 = vmatpush1.msra.mxu0 %v290
    %325 = vmatprep.subr.mxu0 0.0
    %326 = vmatpush1.msra.mxu0 %v289
    %327 = vmatprep.subr.mxu0 0.0
    %328 = vmatpush1.msra.mxu0 %v288
    %329 = vmatprep.subr.mxu0 0.0
    %330 = vmatpush1.msra.mxu0 %v287
    %331 = vmatprep.subr.mxu0 0.0
    %332 = vmatpush2.msra.mxu0 0.0
    %333 = vmatprep.subr.mxu0 0.0
    %334 = vmatpush2.msra.mxu0 0.0
    %335 = vmatprep.subr.mxu0 0.0
    %336 = vmatpush2.msra.mxu0 0.0
    %337 = vmatprep.subr.mxu0 0.0
    %338 = vmatpush2.msra.mxu0 0.0
    %339 = vmatprep.subr.mxu0 0.0
    %340 = vmatpush2.msra.mxu0 0.0
    %341 = vmatprep.subr.mxu0 0.0
    %342 = vmatpush2.msra.mxu0 0.0
    %343 = vmatprep.subr.mxu0 0.0
    %344 = vmatpush2.msra.mxu0 0.0
    %345 = vmatprep.subr.mxu0 0.0
    %346 = vmatpush2.msra.mxu0 0.0
    %347 = vmatprep.subr.mxu0 0.0
    %348 = vmatpush2.msra.mxu0 0.0
    %349 = vmatprep.subr.mxu0 0.0
    %350 = vmatpush2.msra.mxu0 0.0
    %351 = vmatprep.subr.mxu0 0.0
    %352 = vmatpush2.msra.mxu0 0.0
    %353 = vmatprep.subr.mxu0 0.0
    %354 = vmatpush2.msra.mxu0 0.0
    %355 = vmatprep.subr.mxu0 0.0
    %356 = vmatpush2.msra.mxu0 0.0
    %357 = vmatprep.subr.mxu0 0.0
    %358 = vmatpush2.msra.mxu0 0.0
    %359 = vmatprep.subr.mxu0 0.0
    %360 = vmatpush2.msra.mxu0 0.0
    %361 = vmatprep.subr.mxu0 0.0
    %362 = vmatpush2.msra.mxu0 0.0
    %363 = vmatprep.mubr.f32.mxu0 0.0
    %364 = vmatmul.mubr.f32.gmra.mxu0 %v297
    %v365 = vpop.f32.mrf.mxu0
    %v366 = vadd.f32 0.0, %v365
    %v367 = vpop.f32.mrf.mxu0
    %368 = vdwg.mxu0
    %v369 = vld [vmem:[%s7] sm:$0xff]
    %v370 = vld [vmem:[%s7 + $0x8] sm:$0xff]
    %v371 = vld [vmem:[%s7 + $0x10] sm:$0xff]
    %v372 = vld [vmem:[%s7 + $0x18] sm:$0xff]
    %v373 = vld [vmem:[%s7 + $0x20] sm:$0xff]
    %v374 = vld [vmem:[%s7 + $0x28] sm:$0xff]
    %v375 = vld [vmem:[%s7 + $0x30] sm:$0xff]
    %v376 = vld [vmem:[%s7 + $0x38] sm:$0xff]
    %377 = vmatprep.subr.mxu0 0.0
    %378 = vmatpush1.msra.mxu0 0.0
    %379 = vmatprep.subr.mxu0 0.0
    %380 = vmatpush1.msra.mxu0 0.0
    %381 = vmatprep.subr.mxu0 0.0
    %382 = vmatpush1.msra.mxu0 0.0
    %383 = vmatprep.subr.mxu0 0.0
    %384 = vmatpush1.msra.mxu0 0.0
    %385 = vmatprep.subr.mxu0 0.0
    %386 = vmatpush1.msra.mxu0 0.0
    %387 = vmatprep.subr.mxu0 0.0
    %388 = vmatpush1.msra.mxu0 0.0
    %389 = vmatprep.subr.mxu0 0.0
    %390 = vmatpush1.msra.mxu0 0.0
    %391 = vmatprep.subr.mxu0 0.0
    %392 = vmatpush1.msra.mxu0 0.0
    %393 = vmatprep.subr.mxu0 0.0
    %394 = vmatpush1.msra.mxu0 %v376
    %395 = vmatprep.subr.mxu0 0.0
    %396 = vmatpush1.msra.mxu0 %v375
    %397 = vmatprep.subr.mxu0 0.0
    %398 = vmatpush1.msra.mxu0 %v374
    %399 = vmatprep.subr.mxu0 0.0
    %400 = vmatpush1.msra.mxu0 %v373
    %401 = vmatprep.subr.mxu0 0.0
    %402 = vmatpush1.msra.mxu0 %v372
    %403 = vmatprep.subr.mxu0 0.0
    %404 = vmatpush1.msra.mxu0 %v371
    %405 = vmatprep.subr.mxu0 0.0
    %406 = vmatpush1.msra.mxu0 %v370
    %407 = vmatprep.subr.mxu0 0.0
    %408 = vmatpush1.msra.mxu0 %v369
    %409 = vmatprep.subr.mxu0 0.0
    %410 = vmatpush2.msra.mxu0 0.0
    %411 = vmatprep.subr.mxu0 0.0
    %412 = vmatpush2.msra.mxu0 0.0
    %413 = vmatprep.subr.mxu0 0.0
    %414 = vmatpush2.msra.mxu0 0.0
    %415 = vmatprep.subr.mxu0 0.0
    %416 = vmatpush2.msra.mxu0 0.0
    %417 = vmatprep.subr.mxu0 0.0
    %418 = vmatpush2.msra.mxu0 0.0
    %419 = vmatprep.subr.mxu0 0.0
    %420 = vmatpush2.msra.mxu0 0.0
    %421 = vmatprep.subr.mxu0 0.0
    %422 = vmatpush2.msra.mxu0 0.0
    %423 = vmatprep.subr.mxu0 0.0
    %424 = vmatpush2.msra.mxu0 0.0
    %425 = vmatprep.subr.mxu0 0.0
    %426 = vmatpush2.msra.mxu0 0.0
    %427 = vmatprep.subr.mxu0 0.0
    %428 = vmatpush2.msra.mxu0 0.0
    %429 = vmatprep.subr.mxu0 0.0
    %430 = vmatpush2.msra.mxu0 0.0
    %431 = vmatprep.subr.mxu0 0.0
    %432 = vmatpush2.msra.mxu0 0.0
    %433 = vmatprep.subr.mxu0 0.0
    %434 = vmatpush2.msra.mxu0 0.0
    %435 = vmatprep.subr.mxu0 0.0
    %436 = vmatpush2.msra.mxu0 0.0
    %437 = vmatprep.subr.mxu0 0.0
    %438 = vmatpush2.msra.mxu0 0.0
    %439 = vmatprep.subr.mxu0 0.0
    %440 = vmatpush2.msra.mxu0 0.0
    %441 = vmatprep.mubr.f32.mxu0 0.0
    %442 = vmatmul.mubr.f32.gmra.mxu0 %v297
    %v443 = vpop.f32.mrf.mxu0
    %v444 = vadd.f32 0.0, %v443
    %v445 = vpop.f32.mrf.mxu0
    %446 = vdwg.mxu0
    %v447 = vld [vmem:[%s8] sm:$0xff]
    %v448 = vld [vmem:[%s8 + $0x8] sm:$0xff]
    %v449 = vld [vmem:[%s8 + $0x10] sm:$0xff]
    %v450 = vld [vmem:[%s8 + $0x18] sm:$0xff]
    %v451 = vld [vmem:[%s8 + $0x20] sm:$0xff]
    %v452 = vld [vmem:[%s8 + $0x28] sm:$0xff]
    %v453 = vld [vmem:[%s8 + $0x30] sm:$0xff]
    %v454 = vld [vmem:[%s8 + $0x38] sm:$0xff]
    %455 = vmatprep.subr.mxu0 0.0
    %456 = vmatpush1.msra.mxu0 0.0
    %457 = vmatprep.subr.mxu0 0.0
    %458 = vmatpush1.msra.mxu0 0.0
    %459 = vmatprep.subr.mxu0 0.0
    %460 = vmatpush1.msra.mxu0 0.0
    %461 = vmatprep.subr.mxu0 0.0
    %462 = vmatpush1.msra.mxu0 0.0
    %463 = vmatprep.subr.mxu0 0.0
    %464 = vmatpush1.msra.mxu0 0.0
    %465 = vmatprep.subr.mxu0 0.0
    %466 = vmatpush1.msra.mxu0 0.0
    %467 = vmatprep.subr.mxu0 0.0
    %468 = vmatpush1.msra.mxu0 0.0
    %469 = vmatprep.subr.mxu0 0.0
    %470 = vmatpush1.msra.mxu0 0.0
    %471 = vmatprep.subr.mxu0 0.0
    %472 = vmatpush1.msra.mxu0 %v454
    %473 = vmatprep.subr.mxu0 0.0
    %474 = vmatpush1.msra.mxu0 %v453
    %475 = vmatprep.subr.mxu0 0.0
    %476 = vmatpush1.msra.mxu0 %v452
    %477 = vmatprep.subr.mxu0 0.0
    %478 = vmatpush1.msra.mxu0 %v451
    %479 = vmatprep.subr.mxu0 0.0
    %480 = vmatpush1.msra.mxu0 %v450
    %481 = vmatprep.subr.mxu0 0.0
    %482 = vmatpush1.msra.mxu0 %v449
    %483 = vmatprep.subr.mxu0 0.0
    %484 = vmatpush1.msra.mxu0 %v448
    %485 = vmatprep.subr.mxu0 0.0
    %486 = vmatpush1.msra.mxu0 %v447
    %487 = vmatprep.subr.mxu0 0.0
    %488 = vmatpush2.msra.mxu0 0.0
    %489 = vmatprep.subr.mxu0 0.0
    %490 = vmatpush2.msra.mxu0 0.0
    %491 = vmatprep.subr.mxu0 0.0
    %492 = vmatpush2.msra.mxu0 0.0
    %493 = vmatprep.subr.mxu0 0.0
    %494 = vmatpush2.msra.mxu0 0.0
    %495 = vmatprep.subr.mxu0 0.0
    %496 = vmatpush2.msra.mxu0 0.0
    %497 = vmatprep.subr.mxu0 0.0
    %498 = vmatpush2.msra.mxu0 0.0
    %499 = vmatprep.subr.mxu0 0.0
    %500 = vmatpush2.msra.mxu0 0.0
    %501 = vmatprep.subr.mxu0 0.0
    %502 = vmatpush2.msra.mxu0 0.0
    %503 = vmatprep.subr.mxu0 0.0
    %504 = vmatpush2.msra.mxu0 0.0
    %505 = vmatprep.subr.mxu0 0.0
    %506 = vmatpush2.msra.mxu0 0.0
    %507 = vmatprep.subr.mxu0 0.0
    %508 = vmatpush2.msra.mxu0 0.0
    %509 = vmatprep.subr.mxu0 0.0
    %510 = vmatpush2.msra.mxu0 0.0
    %511 = vmatprep.subr.mxu0 0.0
    %512 = vmatpush2.msra.mxu0 0.0
    %513 = vmatprep.subr.mxu0 0.0
    %514 = vmatpush2.msra.mxu0 0.0
    %515 = vmatprep.subr.mxu0 0.0
    %516 = vmatpush2.msra.mxu0 0.0
    %517 = vmatprep.subr.mxu0 0.0
    %518 = vmatpush2.msra.mxu0 0.0
    %519 = vmatprep.mubr.f32.mxu0 0.0
    %520 = vmatmul.mubr.f32.gmra.mxu0 %v297
    %v521 = vpop.f32.mrf.mxu0
    %v522 = vadd.f32 0.0, %v521
    %v523 = vpop.f32.mrf.mxu0
    %524 = vdwg.mxu0
    %v525 = vld [vmem:[%s9] sm:$0x3]
    %v526 = vld [vmem:[%s10] sm:$0x1]
    %v528 = vlaneseq
    %v529 = vshrl.u32 %v528, 7
    %v530 = vsub.s32 0, %v529
    %v531 = vrot.slane %v526, %v530
    %vm533 = vcmask 15360
    %v535 = vsel %vm533, %v366, 0
    %vm537 = vcmask 1041408
    %v539 = vsel %vm537, %v525, 0
    %541 = vmatprep.subr.mxu0 0.0
    %542 = vmatpush1.msra.mxu0 0.0
    %543 = vmatprep.subr.mxu0 0.0
    %544 = vmatpush1.msra.mxu0 0.0
    %545 = vmatprep.subr.mxu0 0.0
    %546 = vmatpush1.msra.mxu0 0.0
    %547 = vmatprep.subr.mxu0 0.0
    %548 = vmatpush1.msra.mxu0 0.0
    %549 = vmatprep.subr.mxu0 0.0
    %550 = vmatpush1.msra.mxu0 0.0
    %551 = vmatprep.subr.mxu0 0.0
    %552 = vmatpush1.msra.mxu0 0.0
    %553 = vmatprep.subr.mxu0 0.0
    %554 = vmatpush1.msra.mxu0 0.0
    %555 = vmatprep.subr.mxu0 0.0
    %556 = vmatpush1.msra.mxu0 0.0
    %557 = vmatprep.subr.mxu0 0.0
    %558 = vmatpush1.msra.mxu0 0.0
    %559 = vmatprep.subr.mxu0 0.0
    %560 = vmatpush1.msra.mxu0 0.0
    %561 = vmatprep.subr.mxu0 0.0
    %562 = vmatpush1.msra.mxu0 0.0
    %563 = vmatprep.subr.mxu0 0.0
    %564 = vmatpush1.msra.mxu0 0.0
    %565 = vmatprep.subr.mxu0 0.0
    %566 = vmatpush1.msra.mxu0 0.0
    %567 = vmatprep.subr.mxu0 0.0
    %568 = vmatpush1.msra.mxu0 0.0
    %569 = vmatprep.subr.mxu0 0.0
    %570 = vmatpush1.msra.mxu0 0.0
    %571 = vmatprep.subr.mxu0 0.0
    %572 = vmatpush1.msra.mxu0 %v539
    %573 = vmatprep.subr.mxu0 0.0
    %574 = vmatpush2.msra.mxu0 0.0
    %575 = vmatprep.subr.mxu0 0.0
    %576 = vmatpush2.msra.mxu0 0.0
    %577 = vmatprep.subr.mxu0 0.0
    %578 = vmatpush2.msra.mxu0 0.0
    %579 = vmatprep.subr.mxu0 0.0
    %580 = vmatpush2.msra.mxu0 0.0
    %581 = vmatprep.subr.mxu0 0.0
    %582 = vmatpush2.msra.mxu0 0.0
    %583 = vmatprep.subr.mxu0 0.0
    %584 = vmatpush2.msra.mxu0 0.0
    %585 = vmatprep.subr.mxu0 0.0
    %586 = vmatpush2.msra.mxu0 0.0
    %587 = vmatprep.subr.mxu0 0.0
    %588 = vmatpush2.msra.mxu0 0.0
    %589 = vmatprep.subr.mxu0 0.0
    %590 = vmatpush2.msra.mxu0 0.0
    %591 = vmatprep.subr.mxu0 0.0
    %592 = vmatpush2.msra.mxu0 0.0
    %593 = vmatprep.subr.mxu0 0.0
    %594 = vmatpush2.msra.mxu0 0.0
    %595 = vmatprep.subr.mxu0 0.0
    %596 = vmatpush2.msra.mxu0 0.0
    %597 = vmatprep.subr.mxu0 0.0
    %598 = vmatpush2.msra.mxu0 0.0
    %599 = vmatprep.subr.mxu0 0.0
    %600 = vmatpush2.msra.mxu0 0.0
    %601 = vmatprep.subr.mxu0 0.0
    %602 = vmatpush2.msra.mxu0 0.0
    %603 = vmatprep.subr.mxu0 0.0
    %604 = vmatpush2.msra.mxu0 0.0
    %605 = vmatprep.mubr.f32.mxu0 0.0
    %606 = vmatmul.mubr.f32.gmra.mxu0 %v535
    %v607 = vpop.f32.mrf.mxu0
    %v608 = vadd.f32 %v531, %v607
    %v609 = vpop.f32.mrf.mxu0
    %610 = vdwg.mxu0
    %v611 = vmax.f32 %v608, 0.0
    %vm612 = vcmp.ne.f32.partialorder %v608, %v608
    %v613 = vadd.f32 %v608, 0.0
    %v614 = vand.u32 2147483647, %v608
    %v615 = vsub.f32 0.0, %v614
    %v616 = vmul.f32 %v615, 1.442695
    %v617 = vpow.pop %v616
    %v618 = vadd.f32 %v617, 1.0
    %v619 = vlog2.pop %v618
    %v620 = vmul.f32 %v619, 0.6931472
    %v621 = vmul.f32 -0.5, %v617
    %v622 = vadd.f32 %v621, 1.0
    %v623 = vmul.f32 %v622, %v617
    %v624 = vand.u32 2147483647, %v617
    %vm625 = vcmp.lt.f32.partialorder %v624, 0.0004427343
    %v626 = vsel %vm625, %v623, %v620
    %v627 = vadd.f32 %v611, %v626
    %v628 = vsel %vm612, %v613, %v627
    %v629 = vmul.f32 %v444, %v522
    %vm630 = vcmask 123904
    %v631 = vsel %vm630, %v629, 0.0
    %632 = vadd.xlane.f32.xlu0 %v631
    %v633 = vpop.xlane.xlu0 %632
    %v634 = vmul.f32 %v628, %v286
    %v635 = vmul.f32 %v634, %v633
    %v636 = vld [vmem:[%s11] sm:$0x1]
    %v638 = vlaneseq
    %v639 = vshrl.u32 %v638, 7
    %v640 = vsub.s32 0, %v639
    %v641 = vrot.slane %v636, %v640
    %v643 = vmul.f32 %v286, %v641
    %v644 = vadd.f32 %v635, %v643
    %v645 = vlaneseq
    %v646 = vshrl.u32 %v645, 7
    %v647 = vsub.s32 0, %v646
    %v648 = vrot.slane %v644, %v647
    %v649 = vlaneseq
    %v650 = vshrl.u32 %v649, 7
    %v651 = vsub.s32 1, %v650
    %v652 = vrot.slane %v644, %v651
    %v653 = vxor.u32 %v175, 2147483648
    %v654 = vxor.u32 %v180, 2147483648
    %v655 = vmul.f32 %v653, 1.442695
    %v656 = vpow.pop %v655
    %v657 = vmul.f32 %v654, 1.442695
    %v658 = vpow.pop %v657
    %v659 = vadd.f32 %v656, 1.0
    %v660 = vadd.f32 %v658, 1.0
    %v661 = vrcp.pop %v659
    %v662 = vmul.f32 1.0, %v661
    %v663 = vrcp.pop %v660
    %v664 = vmul.f32 1.0, %v663
    %v665 = vmul.f32 %v175, %v662
    %v666 = vmul.f32 %v180, %v664
    %v667 = vmul.f32 %v648, %v665
    %v668 = vmul.f32 %v652, %v666
    %v669 = vld [vmem:[%s12] sm:$0xff]
    %v670 = vld [vmem:[%s12 + $0x8] sm:$0xff]
    %v671 = vld [vmem:[%s12 + $0x10] sm:$0xff]
    %v672 = vld [vmem:[%s12 + $0x18] sm:$0xff]
    %v673 = vld [vmem:[%s12 + $0x20] sm:$0xff]
    %v674 = vld [vmem:[%s12 + $0x28] sm:$0xff]
    %v675 = vld [vmem:[%s12 + $0x30] sm:$0xff]
    %v676 = vld [vmem:[%s12 + $0x38] sm:$0xff]
    %v678 = vsel %vm295, %v667, 0
    %v681 = vsel %vm295, %v668, 0
    %683 = vmatprep.subr.mxu0 0.0
    %684 = vmatpush1.msra.mxu0 0.0
    %685 = vmatprep.subr.mxu0 0.0
    %686 = vmatpush1.msra.mxu0 0.0
    %687 = vmatprep.subr.mxu0 0.0
    %688 = vmatpush1.msra.mxu0 0.0
    %689 = vmatprep.subr.mxu0 0.0
    %690 = vmatpush1.msra.mxu0 0.0
    %691 = vmatprep.subr.mxu0 0.0
    %692 = vmatpush1.msra.mxu0 0.0
    %693 = vmatprep.subr.mxu0 0.0
    %694 = vmatpush1.msra.mxu0 0.0
    %695 = vmatprep.subr.mxu0 0.0
    %696 = vmatpush1.msra.mxu0 0.0
    %697 = vmatprep.subr.mxu0 0.0
    %698 = vmatpush1.msra.mxu0 0.0
    %699 = vmatprep.subr.mxu0 0.0
    %700 = vmatpush1.msra.mxu0 %v676
    %701 = vmatprep.subr.mxu0 0.0
    %702 = vmatpush1.msra.mxu0 %v675
    %703 = vmatprep.subr.mxu0 0.0
    %704 = vmatpush1.msra.mxu0 %v674
    %705 = vmatprep.subr.mxu0 0.0
    %706 = vmatpush1.msra.mxu0 %v673
    %707 = vmatprep.subr.mxu0 0.0
    %708 = vmatpush1.msra.mxu0 %v672
    %709 = vmatprep.subr.mxu0 0.0
    %710 = vmatpush1.msra.mxu0 %v671
    %711 = vmatprep.subr.mxu0 0.0
    %712 = vmatpush1.msra.mxu0 %v670
    %713 = vmatprep.subr.mxu0 0.0
    %714 = vmatpush1.msra.mxu0 %v669
    %715 = vmatprep.subr.mxu0 0.0
    %716 = vmatpush2.msra.mxu0 0.0
    %717 = vmatprep.subr.mxu0 0.0
    %718 = vmatpush2.msra.mxu0 0.0
    %719 = vmatprep.subr.mxu0 0.0
    %720 = vmatpush2.msra.mxu0 0.0
    %721 = vmatprep.subr.mxu0 0.0
    %722 = vmatpush2.msra.mxu0 0.0
    %723 = vmatprep.subr.mxu0 0.0
    %724 = vmatpush2.msra.mxu0 0.0
    %725 = vmatprep.subr.mxu0 0.0
    %726 = vmatpush2.msra.mxu0 0.0
    %727 = vmatprep.subr.mxu0 0.0
    %728 = vmatpush2.msra.mxu0 0.0
    %729 = vmatprep.subr.mxu0 0.0
    %730 = vmatpush2.msra.mxu0 0.0
    %731 = vmatprep.subr.mxu0 0.0
    %732 = vmatpush2.msra.mxu0 0.0
    %733 = vmatprep.subr.mxu0 0.0
    %734 = vmatpush2.msra.mxu0 0.0
    %735 = vmatprep.subr.mxu0 0.0
    %736 = vmatpush2.msra.mxu0 0.0
    %737 = vmatprep.subr.mxu0 0.0
    %738 = vmatpush2.msra.mxu0 0.0
    %739 = vmatprep.subr.mxu0 0.0
    %740 = vmatpush2.msra.mxu0 0.0
    %741 = vmatprep.subr.mxu0 0.0
    %742 = vmatpush2.msra.mxu0 0.0
    %743 = vmatprep.subr.mxu0 0.0
    %744 = vmatpush2.msra.mxu0 0.0
    %745 = vmatprep.subr.mxu0 0.0
    %746 = vmatpush2.msra.mxu0 0.0
    %747 = vmatprep.mubr.f32.mxu0 0.0
    %748 = vmatmul.mubr.f32.gmra.mxu0 %v678
    %v749 = vpop.f32.mrf.mxu0
    %v750 = vadd.f32 0.0, %v749
    %v751 = vpop.f32.mrf.mxu0
    %752 = vmatprep.mubr.f32.mxu0 0.0
    %753 = vmatmul.mubr.f32.gmra.mxu0 %v681
    %v754 = vpop.f32.mrf.mxu0
    %v755 = vadd.f32 0.0, %v754
    %v756 = vpop.f32.mrf.mxu0
    %757 = vdwg.mxu0
    %v758 = vadd.f32 %v69, %v750
    %v759 = vadd.f32 %v70, %v755
    %v760 = vld [vmem:[%s13] sm:$0x1]
    %v761 = vld [vmem:[%s14] sm:$0x1]
    %v762 = vsel %vm73, %v758, 0.0
    %763 = vadd.xlane.f32.xlu0 %v762
    %v764 = vpop.xlane.xlu0 %763
    %v765 = vsel %vm73, %v759, 0.0
    %766 = vadd.xlane.f32.xlu0 %v765
    %v767 = vpop.xlane.xlu0 %766
    %v768 = vmul.f32 %v764, %v80
    %v769 = vmul.f32 %v767, %v80
    %v770 = vsub.f32 %v758, %v768
    %v771 = vsub.f32 %v759, %v769
    %v772 = vmul.f32 %v770, %v770
    %v773 = vmul.f32 %v771, %v771
    %v774 = vsel %vm73, %v772, 0.0
    %775 = vadd.xlane.f32.xlu0 %v774
    %v776 = vpop.xlane.xlu0 %775
    %v777 = vsel %vm73, %v773, 0.0
    %778 = vadd.xlane.f32.xlu0 %v777
    %v779 = vpop.xlane.xlu0 %778
    %v780 = vmul.f32 %v776, %v80
    %v781 = vmul.f32 %v779, %v80
    %v782 = vadd.f32 %v780, 1e-05
    %v783 = vadd.f32 %v781, 1e-05
    %v784 = vrsqrt.pop %v782
    %v785 = vrsqrt.pop %v783
    %v786 = vmul.f32 %v770, %v784
    %v787 = vmul.f32 %v771, %v785
    %v789 = vlaneseq
    %v790 = vshrl.u32 %v789, 7
    %v791 = vsub.s32 0, %v790
    %v792 = vrot.slane %v760, %v791
    %v794 = vmul.f32 %v786, %v792
    %v795 = vmul.f32 %v787, %v792
    %v797 = vlaneseq
    %v798 = vshrl.u32 %v797, 7
    %v799 = vsub.s32 0, %v798
    %v800 = vrot.slane %v761, %v799
    %v802 = vadd.f32 %v794, %v800
    %v803 = vadd.f32 %v795, %v800
    %v804 = vld [vmem:[%s15] sm:$0xff]
    %v805 = vld [vmem:[%s15 + $0x8] sm:$0xff]
    %v806 = vld [vmem:[%s15 + $0x10] sm:$0xff]
    %v807 = vld [vmem:[%s15 + $0x18] sm:$0xff]
    %v808 = vld [vmem:[%s16] sm:$0x1]
    %v810 = vlaneseq
    %v811 = vshrl.u32 %v810, 7
    %v812 = vsub.s32 0, %v811
    %v813 = vrot.slane %v808, %v812
    %v816 = vsel %vm73, %v802, 0
    %v819 = vsel %vm73, %v803, 0
    %821 = vmatprep.subr.mxu0 0.0
    %822 = vmatpush1.msra.mxu0 0.0
    %823 = vmatprep.subr.mxu0 0.0
    %824 = vmatpush1.msra.mxu0 0.0
    %825 = vmatprep.subr.mxu0 0.0
    %826 = vmatpush1.msra.mxu0 0.0
    %827 = vmatprep.subr.mxu0 0.0
    %828 = vmatpush1.msra.mxu0 0.0
    %829 = vmatprep.subr.mxu0 0.0
    %830 = vmatpush1.msra.mxu0 0.0
    %831 = vmatprep.subr.mxu0 0.0
    %832 = vmatpush1.msra.mxu0 0.0
    %833 = vmatprep.subr.mxu0 0.0
    %834 = vmatpush1.msra.mxu0 0.0
    %835 = vmatprep.subr.mxu0 0.0
    %836 = vmatpush1.msra.mxu0 0.0
    %837 = vmatprep.subr.mxu0 0.0
    %838 = vmatpush1.msra.mxu0 0.0
    %839 = vmatprep.subr.mxu0 0.0
    %840 = vmatpush1.msra.mxu0 0.0
    %841 = vmatprep.subr.mxu0 0.0
    %842 = vmatpush1.msra.mxu0 0.0
    %843 = vmatprep.subr.mxu0 0.0
    %844 = vmatpush1.msra.mxu0 0.0
    %845 = vmatprep.subr.mxu0 0.0
    %846 = vmatpush1.msra.mxu0 %v807
    %847 = vmatprep.subr.mxu0 0.0
    %848 = vmatpush1.msra.mxu0 %v806
    %849 = vmatprep.subr.mxu0 0.0
    %850 = vmatpush1.msra.mxu0 %v805
    %851 = vmatprep.subr.mxu0 0.0
    %852 = vmatpush1.msra.mxu0 %v804
    %853 = vmatprep.subr.mxu0 0.0
    %854 = vmatpush2.msra.mxu0 0.0
    %855 = vmatprep.subr.mxu0 0.0
    %856 = vmatpush2.msra.mxu0 0.0
    %857 = vmatprep.subr.mxu0 0.0
    %858 = vmatpush2.msra.mxu0 0.0
    %859 = vmatprep.subr.mxu0 0.0
    %860 = vmatpush2.msra.mxu0 0.0
    %861 = vmatprep.subr.mxu0 0.0
    %862 = vmatpush2.msra.mxu0 0.0
    %863 = vmatprep.subr.mxu0 0.0
    %864 = vmatpush2.msra.mxu0 0.0
    %865 = vmatprep.subr.mxu0 0.0
    %866 = vmatpush2.msra.mxu0 0.0
    %867 = vmatprep.subr.mxu0 0.0
    %868 = vmatpush2.msra.mxu0 0.0
    %869 = vmatprep.subr.mxu0 0.0
    %870 = vmatpush2.msra.mxu0 0.0
    %871 = vmatprep.subr.mxu0 0.0
    %872 = vmatpush2.msra.mxu0 0.0
    %873 = vmatprep.subr.mxu0 0.0
    %874 = vmatpush2.msra.mxu0 0.0
    %875 = vmatprep.subr.mxu0 0.0
    %876 = vmatpush2.msra.mxu0 0.0
    %877 = vmatprep.subr.mxu0 0.0
    %878 = vmatpush2.msra.mxu0 0.0
    %879 = vmatprep.subr.mxu0 0.0
    %880 = vmatpush2.msra.mxu0 0.0
    %881 = vmatprep.subr.mxu0 0.0
    %882 = vmatpush2.msra.mxu0 0.0
    %883 = vmatprep.subr.mxu0 0.0
    %884 = vmatpush2.msra.mxu0 0.0
    %885 = vmatprep.mubr.f32.mxu0 0.0
    %886 = vmatmul.mubr.f32.gmra.mxu0 %v816
    %v887 = vpop.f32.mrf.mxu0
    %v888 = vadd.f32 %v813, %v887
    %v889 = vpop.f32.mrf.mxu0
    %890 = vmatprep.mubr.f32.mxu0 0.0
    %891 = vmatmul.mubr.f32.gmra.mxu0 %v819
    %v892 = vpop.f32.mrf.mxu0
    %v893 = vadd.f32 %v813, %v892
    %v894 = vpop.f32.mrf.mxu0
    %895 = vdwg.mxu0
    %v896 = vmul.f32 %v888, 0.5
    %v897 = vmul.f32 %v893, 0.5
    %v898 = vmul.f32 %v888, 0.70710677
    %v899 = vmul.f32 %v893, 0.70710677
    %v900 = vand.u32 2147483647, %v898
    %v901 = vand.u32 2147483647, %v899
    %v902 = vmul.f32 %v900, 0.3275911
    %v903 = vmul.f32 %v901, 0.3275911
    %v904 = vadd.f32 %v902, 1.0
    %v905 = vadd.f32 %v903, 1.0
    %v906 = vrcp.pop %v904
    %v907 = vmul.f32 1.0, %v906
    %v908 = vrcp.pop %v905
    %v909 = vmul.f32 1.0, %v908
    %v910 = vmul.f32 %v907, 1.0614054
    %v911 = vmul.f32 %v909, 1.0614054
    %v912 = vadd.f32 %v910, -1.4531521
    %v913 = vadd.f32 %v911, -1.4531521
    %v914 = vmul.f32 %v912, %v907
    %v915 = vmul.f32 %v913, %v909
    %v916 = vadd.f32 %v914, 1.4214138
    %v917 = vadd.f32 %v915, 1.4214138
    %v918 = vmul.f32 %v916, %v907
    %v919 = vmul.f32 %v917, %v909
    %v920 = vadd.f32 %v918, -0.28449672
    %v921 = vadd.f32 %v919, -0.28449672
    %v922 = vmul.f32 %v920, %v907
    %v923 = vmul.f32 %v921, %v909
    %v924 = vadd.f32 %v922, 0.2548296
    %v925 = vadd.f32 %v923, 0.2548296
    %v926 = vmul.f32 %v924, %v907
    %v927 = vmul.f32 %v925, %v909
    %v928 = vsub.f32 0.0, %v900
    %v929 = vsub.f32 0.0, %v901
    %v930 = vmul.f32 %v928, %v900
    %v931 = vmul.f32 %v929, %v901
    %v932 = vmul.f32 %v930, 1.442695
    %v933 = vpow.pop %v932
    %v934 = vmul.f32 %v931, 1.442695
    %v935 = vpow.pop %v934
    %v936 = vmul.f32 %v926, %v933
    %v937 = vmul.f32 %v927, %v935
    %v938 = vsub.f32 1.0, %v936
    %v939 = vsub.f32 1.0, %v937
    %vm940 = vcmp.lt.f32.partialorder %v898, 0.0
    %vm941 = vcmp.lt.f32.partialorder %v899, 0.0
    %v942 = vsub.f32 0.0, %v938
    %v943 = vsub.f32 0.0, %v939
    %v944 = vsel %vm940, %v942, %v938
    %v945 = vsel %vm941, %v943, %v939
    %v946 = vadd.f32 %v944, 1.0
    %v947 = vadd.f32 %v945, 1.0
    %v948 = vmul.f32 %v896, %v946
    %v949 = vmul.f32 %v897, %v947
    %v950 = vld [vmem:[%s17] sm:$0xff]
    %v951 = vld [vmem:[%s17 + $0x8] sm:$0xff]
    %v952 = vld [vmem:[%s17 + $0x10] sm:$0xff]
    %v953 = vld [vmem:[%s17 + $0x18] sm:$0xff]
    %v954 = vld [vmem:[%s17 + $0x20] sm:$0xff]
    %v955 = vld [vmem:[%s17 + $0x28] sm:$0xff]
    %v956 = vld [vmem:[%s17 + $0x30] sm:$0xff]
    %v957 = vld [vmem:[%s17 + $0x38] sm:$0xff]
    %v959 = vsel %vm295, %v948, 0
    %v962 = vsel %vm295, %v949, 0
    %964 = vmatprep.subr.mxu0 0.0
    %965 = vmatpush1.msra.mxu0 0.0
    %966 = vmatprep.subr.mxu0 0.0
    %967 = vmatpush1.msra.mxu0 0.0
    %968 = vmatprep.subr.mxu0 0.0
    %969 = vmatpush1.msra.mxu0 0.0
    %970 = vmatprep.subr.mxu0 0.0
    %971 = vmatpush1.msra.mxu0 0.0
    %972 = vmatprep.subr.mxu0 0.0
    %973 = vmatpush1.msra.mxu0 0.0
    %974 = vmatprep.subr.mxu0 0.0
    %975 = vmatpush1.msra.mxu0 0.0
    %976 = vmatprep.subr.mxu0 0.0
    %977 = vmatpush1.msra.mxu0 0.0
    %978 = vmatprep.subr.mxu0 0.0
    %979 = vmatpush1.msra.mxu0 0.0
    %980 = vmatprep.subr.mxu0 0.0
    %981 = vmatpush1.msra.mxu0 %v957
    %982 = vmatprep.subr.mxu0 0.0
    %983 = vmatpush1.msra.mxu0 %v956
    %984 = vmatprep.subr.mxu0 0.0
    %985 = vmatpush1.msra.mxu0 %v955
    %986 = vmatprep.subr.mxu0 0.0
    %987 = vmatpush1.msra.mxu0 %v954
    %988 = vmatprep.subr.mxu0 0.0
    %989 = vmatpush1.msra.mxu0 %v953
    %990 = vmatprep.subr.mxu0 0.0
    %991 = vmatpush1.msra.mxu0 %v952
    %992 = vmatprep.subr.mxu0 0.0
    %993 = vmatpush1.msra.mxu0 %v951
    %994 = vmatprep.subr.mxu0 0.0
    %995 = vmatpush1.msra.mxu0 %v950
    %996 = vmatprep.subr.mxu0 0.0
    %997 = vmatpush2.msra.mxu0 0.0
    %998 = vmatprep.subr.mxu0 0.0
    %999 = vmatpush2.msra.mxu0 0.0
    %1000 = vmatprep.subr.mxu0 0.0
    %1001 = vmatpush2.msra.mxu0 0.0
    %1002 = vmatprep.subr.mxu0 0.0
    %1003 = vmatpush2.msra.mxu0 0.0
    %1004 = vmatprep.subr.mxu0 0.0
    %1005 = vmatpush2.msra.mxu0 0.0
    %1006 = vmatprep.subr.mxu0 0.0
    %1007 = vmatpush2.msra.mxu0 0.0
    %1008 = vmatprep.subr.mxu0 0.0
    %1009 = vmatpush2.msra.mxu0 0.0
    %1010 = vmatprep.subr.mxu0 0.0
    %1011 = vmatpush2.msra.mxu0 0.0
    %1012 = vmatprep.subr.mxu0 0.0
    %1013 = vmatpush2.msra.mxu0 0.0
    %1014 = vmatprep.subr.mxu0 0.0
    %1015 = vmatpush2.msra.mxu0 0.0
    %1016 = vmatprep.subr.mxu0 0.0
    %1017 = vmatpush2.msra.mxu0 0.0
    %1018 = vmatprep.subr.mxu0 0.0
    %1019 = vmatpush2.msra.mxu0 0.0
    %1020 = vmatprep.subr.mxu0 0.0
    %1021 = vmatpush2.msra.mxu0 0.0
    %1022 = vmatprep.subr.mxu0 0.0
    %1023 = vmatpush2.msra.mxu0 0.0
    %1024 = vmatprep.subr.mxu0 0.0
    %1025 = vmatpush2.msra.mxu0 0.0
    %1026 = vmatprep.subr.mxu0 0.0
    %1027 = vmatpush2.msra.mxu0 0.0
    %1028 = vmatprep.mubr.f32.mxu0 0.0
    %1029 = vmatmul.mubr.f32.gmra.mxu0 %v959
    %v1030 = vpop.f32.mrf.mxu0
    %v1031 = vadd.f32 0.0, %v1030
    %v1032 = vpop.f32.mrf.mxu0
    %1033 = vmatprep.mubr.f32.mxu0 0.0
    %1034 = vmatmul.mubr.f32.gmra.mxu0 %v962
    %v1035 = vpop.f32.mrf.mxu0
    %v1036 = vadd.f32 0.0, %v1035
    %v1037 = vpop.f32.mrf.mxu0
    %1038 = vdwg.mxu0
    %v1039 = vadd.f32 %v758, %v1031
    %v1040 = vadd.f32 %v759, %v1036
    %v1041 = vld [vmem:[%s18] sm:$0x1]
    %v1043 = vlaneseq
    %v1044 = vshrl.u32 %v1043, 7
    %v1045 = vsub.s32 0, %v1044
    %v1046 = vrot.slane %v1041, %v1045
    %v1048 = vadd.f32 %v1039, %v1046
    %v1049 = vadd.f32 %v1040, %v1046
    %v1050 = vmul.f32 %v1048, %v1048
    %v1051 = vmul.f32 %v1049, %v1049
    %v1052 = vsel %vm73, %v1050, 0.0
    %1053 = vadd.xlane.f32.xlu0 %v1052
    %v1054 = vpop.xlane.xlu0 %1053
    %v1055 = vsel %vm73, %v1051, 0.0
    %1056 = vadd.xlane.f32.xlu0 %v1055
    %v1057 = vpop.xlane.xlu0 %1056
    %v1058 = vmul.f32 %v1054, %v80
    %v1059 = vmul.f32 %v1057, %v80
    %v1060 = vadd.f32 %v1058, 1e-05
    %v1061 = vadd.f32 %v1059, 1e-05
    %v1062 = vrsqrt.pop %v1060
    %v1063 = vrsqrt.pop %v1061
    %v1064 = vmul.f32 %v1048, %v1062
    %v1065 = vmul.f32 %v1049, %v1063
    %s1066 = scalar_lea.vmem %s1, 1
    %v1067 = vld [vmem:[%s1066] sm:$0x1]
    %v1069 = vlaneseq
    %v1070 = vshrl.u32 %v1069, 7
    %v1071 = vsub.s32 0, %v1070
    %v1072 = vrot.slane %v1067, %v1071
    %v1074 = vmul.f32 %v1064, %v1072
    %v1075 = vmul.f32 %v1065, %v1072
    %s1076 = scalar_lea.vmem %s3, 32
    %v1077 = vld [vmem:[%s1076] sm:$0xff]
    %v1078 = vld [vmem:[%s1076 + $0x8] sm:$0xff]
    %v1079 = vld [vmem:[%s1076 + $0x10] sm:$0xff]
    %v1080 = vld [vmem:[%s1076 + $0x18] sm:$0xff]
    %v1082 = vsel %vm73, %v1074, 0
    %v1085 = vsel %vm73, %v1075, 0
    %1087 = vmatprep.subr.mxu0 0.0
    %1088 = vmatpush1.msra.mxu0 0.0
    %1089 = vmatprep.subr.mxu0 0.0
    %1090 = vmatpush1.msra.mxu0 0.0
    %1091 = vmatprep.subr.mxu0 0.0
    %1092 = vmatpush1.msra.mxu0 0.0
    %1093 = vmatprep.subr.mxu0 0.0
    %1094 = vmatpush1.msra.mxu0 0.0
    %1095 = vmatprep.subr.mxu0 0.0
    %1096 = vmatpush1.msra.mxu0 0.0
    %1097 = vmatprep.subr.mxu0 0.0
    %1098 = vmatpush1.msra.mxu0 0.0
    %1099 = vmatprep.subr.mxu0 0.0
    %1100 = vmatpush1.msra.mxu0 0.0
    %1101 = vmatprep.subr.mxu0 0.0
    %1102 = vmatpush1.msra.mxu0 0.0
    %1103 = vmatprep.subr.mxu0 0.0
    %1104 = vmatpush1.msra.mxu0 0.0
    %1105 = vmatprep.subr.mxu0 0.0
    %1106 = vmatpush1.msra.mxu0 0.0
    %1107 = vmatprep.subr.mxu0 0.0
    %1108 = vmatpush1.msra.mxu0 0.0
    %1109 = vmatprep.subr.mxu0 0.0
    %1110 = vmatpush1.msra.mxu0 0.0
    %1111 = vmatprep.subr.mxu0 0.0
    %1112 = vmatpush1.msra.mxu0 %v1080
    %1113 = vmatprep.subr.mxu0 0.0
    %1114 = vmatpush1.msra.mxu0 %v1079
    %1115 = vmatprep.subr.mxu0 0.0
    %1116 = vmatpush1.msra.mxu0 %v1078
    %1117 = vmatprep.subr.mxu0 0.0
    %1118 = vmatpush1.msra.mxu0 %v1077
    %1119 = vmatprep.subr.mxu0 0.0
    %1120 = vmatpush2.msra.mxu0 0.0
    %1121 = vmatprep.subr.mxu0 0.0
    %1122 = vmatpush2.msra.mxu0 0.0
    %1123 = vmatprep.subr.mxu0 0.0
    %1124 = vmatpush2.msra.mxu0 0.0
    %1125 = vmatprep.subr.mxu0 0.0
    %1126 = vmatpush2.msra.mxu0 0.0
    %1127 = vmatprep.subr.mxu0 0.0
    %1128 = vmatpush2.msra.mxu0 0.0
    %1129 = vmatprep.subr.mxu0 0.0
    %1130 = vmatpush2.msra.mxu0 0.0
    %1131 = vmatprep.subr.mxu0 0.0
    %1132 = vmatpush2.msra.mxu0 0.0
    %1133 = vmatprep.subr.mxu0 0.0
    %1134 = vmatpush2.msra.mxu0 0.0
    %1135 = vmatprep.subr.mxu0 0.0
    %1136 = vmatpush2.msra.mxu0 0.0
    %1137 = vmatprep.subr.mxu0 0.0
    %1138 = vmatpush2.msra.mxu0 0.0
    %1139 = vmatprep.subr.mxu0 0.0
    %1140 = vmatpush2.msra.mxu0 0.0
    %1141 = vmatprep.subr.mxu0 0.0
    %1142 = vmatpush2.msra.mxu0 0.0
    %1143 = vmatprep.subr.mxu0 0.0
    %1144 = vmatpush2.msra.mxu0 0.0
    %1145 = vmatprep.subr.mxu0 0.0
    %1146 = vmatpush2.msra.mxu0 0.0
    %1147 = vmatprep.subr.mxu0 0.0
    %1148 = vmatpush2.msra.mxu0 0.0
    %1149 = vmatprep.subr.mxu0 0.0
    %1150 = vmatpush2.msra.mxu0 0.0
    %1151 = vmatprep.mubr.f32.mxu0 0.0
    %1152 = vmatmul.mubr.f32.gmra.mxu0 %v1082
    %v1153 = vpop.f32.mrf.mxu0
    %v1154 = vadd.f32 0.0, %v1153
    %v1155 = vpop.f32.mrf.mxu0
    %1156 = vmatprep.mubr.f32.mxu0 0.0
    %1157 = vmatmul.mubr.f32.gmra.mxu0 %v1085
    %v1158 = vpop.f32.mrf.mxu0
    %v1159 = vadd.f32 0.0, %v1158
    %v1160 = vpop.f32.mrf.mxu0
    %1161 = vdwg.mxu0
    %v1162 = vrot.slane %v1075, 7
    %v1164 = vsel %vm185, %v1074, %v1162
    %s1165 = scalar_lea.vmem %s2, 32
    %v1166 = vld [vmem:[%s1165] sm:$0xff]
    %v1167 = vld [vmem:[%s1165 + $0x8] sm:$0xff]
    %v1168 = vld [vmem:[%s1165 + $0x10] sm:$0xff]
    %v1169 = vld [vmem:[%s1165 + $0x18] sm:$0xff]
    %v1171 = vsel %vm73, %v1164, 0
    %1173 = vmatprep.subr.mxu0 0.0
    %1174 = vmatpush1.msra.mxu0 0.0
    %1175 = vmatprep.subr.mxu0 0.0
    %1176 = vmatpush1.msra.mxu0 0.0
    %1177 = vmatprep.subr.mxu0 0.0
    %1178 = vmatpush1.msra.mxu0 0.0
    %1179 = vmatprep.subr.mxu0 0.0
    %1180 = vmatpush1.msra.mxu0 0.0
    %1181 = vmatprep.subr.mxu0 0.0
    %1182 = vmatpush1.msra.mxu0 0.0
    %1183 = vmatprep.subr.mxu0 0.0
    %1184 = vmatpush1.msra.mxu0 0.0
    %1185 = vmatprep.subr.mxu0 0.0
    %1186 = vmatpush1.msra.mxu0 0.0
    %1187 = vmatprep.subr.mxu0 0.0
    %1188 = vmatpush1.msra.mxu0 0.0
    %1189 = vmatprep.subr.mxu0 0.0
    %1190 = vmatpush1.msra.mxu0 0.0
    %1191 = vmatprep.subr.mxu0 0.0
    %1192 = vmatpush1.msra.mxu0 0.0
    %1193 = vmatprep.subr.mxu0 0.0
    %1194 = vmatpush1.msra.mxu0 0.0
    %1195 = vmatprep.subr.mxu0 0.0
    %1196 = vmatpush1.msra.mxu0 0.0
    %1197 = vmatprep.subr.mxu0 0.0
    %1198 = vmatpush1.msra.mxu0 %v1169
    %1199 = vmatprep.subr.mxu0 0.0
    %1200 = vmatpush1.msra.mxu0 %v1168
    %1201 = vmatprep.subr.mxu0 0.0
    %1202 = vmatpush1.msra.mxu0 %v1167
    %1203 = vmatprep.subr.mxu0 0.0
    %1204 = vmatpush1.msra.mxu0 %v1166
    %1205 = vmatprep.subr.mxu0 0.0
    %1206 = vmatpush2.msra.mxu0 0.0
    %1207 = vmatprep.subr.mxu0 0.0
    %1208 = vmatpush2.msra.mxu0 0.0
    %1209 = vmatprep.subr.mxu0 0.0
    %1210 = vmatpush2.msra.mxu0 0.0
    %1211 = vmatprep.subr.mxu0 0.0
    %1212 = vmatpush2.msra.mxu0 0.0
    %1213 = vmatprep.subr.mxu0 0.0
    %1214 = vmatpush2.msra.mxu0 0.0
    %1215 = vmatprep.subr.mxu0 0.0
    %1216 = vmatpush2.msra.mxu0 0.0
    %1217 = vmatprep.subr.mxu0 0.0
    %1218 = vmatpush2.msra.mxu0 0.0
    %1219 = vmatprep.subr.mxu0 0.0
    %1220 = vmatpush2.msra.mxu0 0.0
    %1221 = vmatprep.subr.mxu0 0.0
    %1222 = vmatpush2.msra.mxu0 0.0
    %1223 = vmatprep.subr.mxu0 0.0
    %1224 = vmatpush2.msra.mxu0 0.0
    %1225 = vmatprep.subr.mxu0 0.0
    %1226 = vmatpush2.msra.mxu0 0.0
    %1227 = vmatprep.subr.mxu0 0.0
    %1228 = vmatpush2.msra.mxu0 0.0
    %1229 = vmatprep.subr.mxu0 0.0
    %1230 = vmatpush2.msra.mxu0 0.0
    %1231 = vmatprep.subr.mxu0 0.0
    %1232 = vmatpush2.msra.mxu0 0.0
    %1233 = vmatprep.subr.mxu0 0.0
    %1234 = vmatpush2.msra.mxu0 0.0
    %1235 = vmatprep.subr.mxu0 0.0
    %1236 = vmatpush2.msra.mxu0 0.0
    %1237 = vmatprep.mubr.f32.mxu0 0.0
    %1238 = vmatmul.mubr.f32.gmra.mxu0 %v1171
    %v1239 = vpop.f32.mrf.mxu0
    %v1240 = vadd.f32 0.0, %v1239
    %v1241 = vpop.f32.mrf.mxu0
    %1242 = vdwg.mxu0
    %s1243 = scalar_lea.vmem %s4, 1
    %v1244 = vld [vmem:[%s1243] sm:$0x1]
    %v1246 = vlaneseq
    %v1247 = vshrl.u32 %v1246, 7
    %v1248 = vsub.s32 0, %v1247
    %v1249 = vrot.slane %v1244, %v1248
    %v1251 = vmul.f32 %v1240, %v1249
    %s1252 = scalar_lea.vmem %s5, 1
    %v1253 = vld [vmem:[%s1252] sm:$0x1]
    %v1255 = vlaneseq
    %v1256 = vshrl.u32 %v1255, 7
    %v1257 = vsub.s32 0, %v1256
    %v1258 = vrot.slane %v1253, %v1257
    %v1260 = vadd.f32 %v1251, %v1258
    %v1261 = vxor.u32 %v1260, 2147483648
    %v1262 = vmul.f32 %v1261, 1.442695
    %v1263 = vpow.pop %v1262
    %v1264 = vadd.f32 %v1263, 1.0
    %v1265 = vrcp.pop %v1264
    %v1266 = vmul.f32 1.0, %v1265
    %v1267 = vmul.f32 %v1260, %v1266
    %s1268 = scalar_lea.vmem %s6, 64
    %v1269 = vld [vmem:[%s1268] sm:$0xff]
    %v1270 = vld [vmem:[%s1268 + $0x8] sm:$0xff]
    %v1271 = vld [vmem:[%s1268 + $0x10] sm:$0xff]
    %v1272 = vld [vmem:[%s1268 + $0x18] sm:$0xff]
    %v1273 = vld [vmem:[%s1268 + $0x20] sm:$0xff]
    %v1274 = vld [vmem:[%s1268 + $0x28] sm:$0xff]
    %v1275 = vld [vmem:[%s1268 + $0x30] sm:$0xff]
    %v1276 = vld [vmem:[%s1268 + $0x38] sm:$0xff]
    %v1278 = vsel %vm295, %v1267, 0
    %1280 = vmatprep.subr.mxu0 0.0
    %1281 = vmatpush1.msra.mxu0 0.0
    %1282 = vmatprep.subr.mxu0 0.0
    %1283 = vmatpush1.msra.mxu0 0.0
    %1284 = vmatprep.subr.mxu0 0.0
    %1285 = vmatpush1.msra.mxu0 0.0
    %1286 = vmatprep.subr.mxu0 0.0
    %1287 = vmatpush1.msra.mxu0 0.0
    %1288 = vmatprep.subr.mxu0 0.0
    %1289 = vmatpush1.msra.mxu0 0.0
    %1290 = vmatprep.subr.mxu0 0.0
    %1291 = vmatpush1.msra.mxu0 0.0
    %1292 = vmatprep.subr.mxu0 0.0
    %1293 = vmatpush1.msra.mxu0 0.0
    %1294 = vmatprep.subr.mxu0 0.0
    %1295 = vmatpush1.msra.mxu0 0.0
    %1296 = vmatprep.subr.mxu0 0.0
    %1297 = vmatpush1.msra.mxu0 %v1276
    %1298 = vmatprep.subr.mxu0 0.0
    %1299 = vmatpush1.msra.mxu0 %v1275
    %1300 = vmatprep.subr.mxu0 0.0
    %1301 = vmatpush1.msra.mxu0 %v1274
    %1302 = vmatprep.subr.mxu0 0.0
    %1303 = vmatpush1.msra.mxu0 %v1273
    %1304 = vmatprep.subr.mxu0 0.0
    %1305 = vmatpush1.msra.mxu0 %v1272
    %1306 = vmatprep.subr.mxu0 0.0
    %1307 = vmatpush1.msra.mxu0 %v1271
    %1308 = vmatprep.subr.mxu0 0.0
    %1309 = vmatpush1.msra.mxu0 %v1270
    %1310 = vmatprep.subr.mxu0 0.0
    %1311 = vmatpush1.msra.mxu0 %v1269
    %1312 = vmatprep.subr.mxu0 0.0
    %1313 = vmatpush2.msra.mxu0 0.0
    %1314 = vmatprep.subr.mxu0 0.0
    %1315 = vmatpush2.msra.mxu0 0.0
    %1316 = vmatprep.subr.mxu0 0.0
    %1317 = vmatpush2.msra.mxu0 0.0
    %1318 = vmatprep.subr.mxu0 0.0
    %1319 = vmatpush2.msra.mxu0 0.0
    %1320 = vmatprep.subr.mxu0 0.0
    %1321 = vmatpush2.msra.mxu0 0.0
    %1322 = vmatprep.subr.mxu0 0.0
    %1323 = vmatpush2.msra.mxu0 0.0
    %1324 = vmatprep.subr.mxu0 0.0
    %1325 = vmatpush2.msra.mxu0 0.0
    %1326 = vmatprep.subr.mxu0 0.0
    %1327 = vmatpush2.msra.mxu0 0.0
    %1328 = vmatprep.subr.mxu0 0.0
    %1329 = vmatpush2.msra.mxu0 0.0
    %1330 = vmatprep.subr.mxu0 0.0
    %1331 = vmatpush2.msra.mxu0 0.0
    %1332 = vmatprep.subr.mxu0 0.0
    %1333 = vmatpush2.msra.mxu0 0.0
    %1334 = vmatprep.subr.mxu0 0.0
    %1335 = vmatpush2.msra.mxu0 0.0
    %1336 = vmatprep.subr.mxu0 0.0
    %1337 = vmatpush2.msra.mxu0 0.0
    %1338 = vmatprep.subr.mxu0 0.0
    %1339 = vmatpush2.msra.mxu0 0.0
    %1340 = vmatprep.subr.mxu0 0.0
    %1341 = vmatpush2.msra.mxu0 0.0
    %1342 = vmatprep.subr.mxu0 0.0
    %1343 = vmatpush2.msra.mxu0 0.0
    %1344 = vmatprep.mubr.f32.mxu0 0.0
    %1345 = vmatmul.mubr.f32.gmra.mxu0 %v1278
    %v1346 = vpop.f32.mrf.mxu0
    %v1347 = vadd.f32 0.0, %v1346
    %v1348 = vpop.f32.mrf.mxu0
    %1349 = vdwg.mxu0
    %s1350 = scalar_lea.vmem %s7, 64
    %v1351 = vld [vmem:[%s1350] sm:$0xff]
    %v1352 = vld [vmem:[%s1350 + $0x8] sm:$0xff]
    %v1353 = vld [vmem:[%s1350 + $0x10] sm:$0xff]
    %v1354 = vld [vmem:[%s1350 + $0x18] sm:$0xff]
    %v1355 = vld [vmem:[%s1350 + $0x20] sm:$0xff]
    %v1356 = vld [vmem:[%s1350 + $0x28] sm:$0xff]
    %v1357 = vld [vmem:[%s1350 + $0x30] sm:$0xff]
    %v1358 = vld [vmem:[%s1350 + $0x38] sm:$0xff]
    %1359 = vmatprep.subr.mxu0 0.0
    %1360 = vmatpush1.msra.mxu0 0.0
    %1361 = vmatprep.subr.mxu0 0.0
    %1362 = vmatpush1.msra.mxu0 0.0
    %1363 = vmatprep.subr.mxu0 0.0
    %1364 = vmatpush1.msra.mxu0 0.0
    %1365 = vmatprep.subr.mxu0 0.0
    %1366 = vmatpush1.msra.mxu0 0.0
    %1367 = vmatprep.subr.mxu0 0.0
    %1368 = vmatpush1.msra.mxu0 0.0
    %1369 = vmatprep.subr.mxu0 0.0
    %1370 = vmatpush1.msra.mxu0 0.0
    %1371 = vmatprep.subr.mxu0 0.0
    %1372 = vmatpush1.msra.mxu0 0.0
    %1373 = vmatprep.subr.mxu0 0.0
    %1374 = vmatpush1.msra.mxu0 0.0
    %1375 = vmatprep.subr.mxu0 0.0
    %1376 = vmatpush1.msra.mxu0 %v1358
    %1377 = vmatprep.subr.mxu0 0.0
    %1378 = vmatpush1.msra.mxu0 %v1357
    %1379 = vmatprep.subr.mxu0 0.0
    %1380 = vmatpush1.msra.mxu0 %v1356
    %1381 = vmatprep.subr.mxu0 0.0
    %1382 = vmatpush1.msra.mxu0 %v1355
    %1383 = vmatprep.subr.mxu0 0.0
    %1384 = vmatpush1.msra.mxu0 %v1354
    %1385 = vmatprep.subr.mxu0 0.0
    %1386 = vmatpush1.msra.mxu0 %v1353
    %1387 = vmatprep.subr.mxu0 0.0
    %1388 = vmatpush1.msra.mxu0 %v1352
    %1389 = vmatprep.subr.mxu0 0.0
    %1390 = vmatpush1.msra.mxu0 %v1351
    %1391 = vmatprep.subr.mxu0 0.0
    %1392 = vmatpush2.msra.mxu0 0.0
    %1393 = vmatprep.subr.mxu0 0.0
    %1394 = vmatpush2.msra.mxu0 0.0
    %1395 = vmatprep.subr.mxu0 0.0
    %1396 = vmatpush2.msra.mxu0 0.0
    %1397 = vmatprep.subr.mxu0 0.0
    %1398 = vmatpush2.msra.mxu0 0.0
    %1399 = vmatprep.subr.mxu0 0.0
    %1400 = vmatpush2.msra.mxu0 0.0
    %1401 = vmatprep.subr.mxu0 0.0
    %1402 = vmatpush2.msra.mxu0 0.0
    %1403 = vmatprep.subr.mxu0 0.0
    %1404 = vmatpush2.msra.mxu0 0.0
    %1405 = vmatprep.subr.mxu0 0.0
    %1406 = vmatpush2.msra.mxu0 0.0
    %1407 = vmatprep.subr.mxu0 0.0
    %1408 = vmatpush2.msra.mxu0 0.0
    %1409 = vmatprep.subr.mxu0 0.0
    %1410 = vmatpush2.msra.mxu0 0.0
    %1411 = vmatprep.subr.mxu0 0.0
    %1412 = vmatpush2.msra.mxu0 0.0
    %1413 = vmatprep.subr.mxu0 0.0
    %1414 = vmatpush2.msra.mxu0 0.0
    %1415 = vmatprep.subr.mxu0 0.0
    %1416 = vmatpush2.msra.mxu0 0.0
    %1417 = vmatprep.subr.mxu0 0.0
    %1418 = vmatpush2.msra.mxu0 0.0
    %1419 = vmatprep.subr.mxu0 0.0
    %1420 = vmatpush2.msra.mxu0 0.0
    %1421 = vmatprep.subr.mxu0 0.0
    %1422 = vmatpush2.msra.mxu0 0.0
    %1423 = vmatprep.mubr.f32.mxu0 0.0
    %1424 = vmatmul.mubr.f32.gmra.mxu0 %v1278
    %v1425 = vpop.f32.mrf.mxu0
    %v1426 = vadd.f32 0.0, %v1425
    %v1427 = vpop.f32.mrf.mxu0
    %1428 = vdwg.mxu0
    %s1429 = scalar_lea.vmem %s8, 64
    %v1430 = vld [vmem:[%s1429] sm:$0xff]
    %v1431 = vld [vmem:[%s1429 + $0x8] sm:$0xff]
    %v1432 = vld [vmem:[%s1429 + $0x10] sm:$0xff]
    %v1433 = vld [vmem:[%s1429 + $0x18] sm:$0xff]
    %v1434 = vld [vmem:[%s1429 + $0x20] sm:$0xff]
    %v1435 = vld [vmem:[%s1429 + $0x28] sm:$0xff]
    %v1436 = vld [vmem:[%s1429 + $0x30] sm:$0xff]
    %v1437 = vld [vmem:[%s1429 + $0x38] sm:$0xff]
    %1438 = vmatprep.subr.mxu0 0.0
    %1439 = vmatpush1.msra.mxu0 0.0
    %1440 = vmatprep.subr.mxu0 0.0
    %1441 = vmatpush1.msra.mxu0 0.0
    %1442 = vmatprep.subr.mxu0 0.0
    %1443 = vmatpush1.msra.mxu0 0.0
    %1444 = vmatprep.subr.mxu0 0.0
    %1445 = vmatpush1.msra.mxu0 0.0
    %1446 = vmatprep.subr.mxu0 0.0
    %1447 = vmatpush1.msra.mxu0 0.0
    %1448 = vmatprep.subr.mxu0 0.0
    %1449 = vmatpush1.msra.mxu0 0.0
    %1450 = vmatprep.subr.mxu0 0.0
    %1451 = vmatpush1.msra.mxu0 0.0
    %1452 = vmatprep.subr.mxu0 0.0
    %1453 = vmatpush1.msra.mxu0 0.0
    %1454 = vmatprep.subr.mxu0 0.0
    %1455 = vmatpush1.msra.mxu0 %v1437
    %1456 = vmatprep.subr.mxu0 0.0
    %1457 = vmatpush1.msra.mxu0 %v1436
    %1458 = vmatprep.subr.mxu0 0.0
    %1459 = vmatpush1.msra.mxu0 %v1435
    %1460 = vmatprep.subr.mxu0 0.0
    %1461 = vmatpush1.msra.mxu0 %v1434
    %1462 = vmatprep.subr.mxu0 0.0
    %1463 = vmatpush1.msra.mxu0 %v1433
    %1464 = vmatprep.subr.mxu0 0.0
    %1465 = vmatpush1.msra.mxu0 %v1432
    %1466 = vmatprep.subr.mxu0 0.0
    %1467 = vmatpush1.msra.mxu0 %v1431
    %1468 = vmatprep.subr.mxu0 0.0
    %1469 = vmatpush1.msra.mxu0 %v1430
    %1470 = vmatprep.subr.mxu0 0.0
    %1471 = vmatpush2.msra.mxu0 0.0
    %1472 = vmatprep.subr.mxu0 0.0
    %1473 = vmatpush2.msra.mxu0 0.0
    %1474 = vmatprep.subr.mxu0 0.0
    %1475 = vmatpush2.msra.mxu0 0.0
    %1476 = vmatprep.subr.mxu0 0.0
    %1477 = vmatpush2.msra.mxu0 0.0
    %1478 = vmatprep.subr.mxu0 0.0
    %1479 = vmatpush2.msra.mxu0 0.0
    %1480 = vmatprep.subr.mxu0 0.0
    %1481 = vmatpush2.msra.mxu0 0.0
    %1482 = vmatprep.subr.mxu0 0.0
    %1483 = vmatpush2.msra.mxu0 0.0
    %1484 = vmatprep.subr.mxu0 0.0
    %1485 = vmatpush2.msra.mxu0 0.0
    %1486 = vmatprep.subr.mxu0 0.0
    %1487 = vmatpush2.msra.mxu0 0.0
    %1488 = vmatprep.subr.mxu0 0.0
    %1489 = vmatpush2.msra.mxu0 0.0
    %1490 = vmatprep.subr.mxu0 0.0
    %1491 = vmatpush2.msra.mxu0 0.0
    %1492 = vmatprep.subr.mxu0 0.0
    %1493 = vmatpush2.msra.mxu0 0.0
    %1494 = vmatprep.subr.mxu0 0.0
    %1495 = vmatpush2.msra.mxu0 0.0
    %1496 = vmatprep.subr.mxu0 0.0
    %1497 = vmatpush2.msra.mxu0 0.0
    %1498 = vmatprep.subr.mxu0 0.0
    %1499 = vmatpush2.msra.mxu0 0.0
    %1500 = vmatprep.subr.mxu0 0.0
    %1501 = vmatpush2.msra.mxu0 0.0
    %1502 = vmatprep.mubr.f32.mxu0 0.0
    %1503 = vmatmul.mubr.f32.gmra.mxu0 %v1278
    %v1504 = vpop.f32.mrf.mxu0
    %v1505 = vadd.f32 0.0, %v1504
    %v1506 = vpop.f32.mrf.mxu0
    %1507 = vdwg.mxu0
    %s1508 = scalar_lea.vmem %s9, 2
    %v1509 = vld [vmem:[%s1508] sm:$0x3]
    %s1510 = scalar_lea.vmem %s10, 1
    %v1511 = vld [vmem:[%s1510] sm:$0x1]
    %v1513 = vlaneseq
    %v1514 = vshrl.u32 %v1513, 7
    %v1515 = vsub.s32 0, %v1514
    %v1516 = vrot.slane %v1511, %v1515
    %v1519 = vsel %vm533, %v1347, 0
    %v1522 = vsel %vm537, %v1509, 0
    %1524 = vmatprep.subr.mxu0 0.0
    %1525 = vmatpush1.msra.mxu0 0.0
    %1526 = vmatprep.subr.mxu0 0.0
    %1527 = vmatpush1.msra.mxu0 0.0
    %1528 = vmatprep.subr.mxu0 0.0
    %1529 = vmatpush1.msra.mxu0 0.0
    %1530 = vmatprep.subr.mxu0 0.0
    %1531 = vmatpush1.msra.mxu0 0.0
    %1532 = vmatprep.subr.mxu0 0.0
    %1533 = vmatpush1.msra.mxu0 0.0
    %1534 = vmatprep.subr.mxu0 0.0
    %1535 = vmatpush1.msra.mxu0 0.0
    %1536 = vmatprep.subr.mxu0 0.0
    %1537 = vmatpush1.msra.mxu0 0.0
    %1538 = vmatprep.subr.mxu0 0.0
    %1539 = vmatpush1.msra.mxu0 0.0
    %1540 = vmatprep.subr.mxu0 0.0
    %1541 = vmatpush1.msra.mxu0 0.0
    %1542 = vmatprep.subr.mxu0 0.0
    %1543 = vmatpush1.msra.mxu0 0.0
    %1544 = vmatprep.subr.mxu0 0.0
    %1545 = vmatpush1.msra.mxu0 0.0
    %1546 = vmatprep.subr.mxu0 0.0
    %1547 = vmatpush1.msra.mxu0 0.0
    %1548 = vmatprep.subr.mxu0 0.0
    %1549 = vmatpush1.msra.mxu0 0.0
    %1550 = vmatprep.subr.mxu0 0.0
    %1551 = vmatpush1.msra.mxu0 0.0
    %1552 = vmatprep.subr.mxu0 0.0
    %1553 = vmatpush1.msra.mxu0 0.0
    %1554 = vmatprep.subr.mxu0 0.0
    %1555 = vmatpush1.msra.mxu0 %v1522
    %1556 = vmatprep.subr.mxu0 0.0
    %1557 = vmatpush2.msra.mxu0 0.0
    %1558 = vmatprep.subr.mxu0 0.0
    %1559 = vmatpush2.msra.mxu0 0.0
    %1560 = vmatprep.subr.mxu0 0.0
    %1561 = vmatpush2.msra.mxu0 0.0
    %1562 = vmatprep.subr.mxu0 0.0
    %1563 = vmatpush2.msra.mxu0 0.0
    %1564 = vmatprep.subr.mxu0 0.0
    %1565 = vmatpush2.msra.mxu0 0.0
    %1566 = vmatprep.subr.mxu0 0.0
    %1567 = vmatpush2.msra.mxu0 0.0
    %1568 = vmatprep.subr.mxu0 0.0
    %1569 = vmatpush2.msra.mxu0 0.0
    %1570 = vmatprep.subr.mxu0 0.0
    %1571 = vmatpush2.msra.mxu0 0.0
    %1572 = vmatprep.subr.mxu0 0.0
    %1573 = vmatpush2.msra.mxu0 0.0
    %1574 = vmatprep.subr.mxu0 0.0
    %1575 = vmatpush2.msra.mxu0 0.0
    %1576 = vmatprep.subr.mxu0 0.0
    %1577 = vmatpush2.msra.mxu0 0.0
    %1578 = vmatprep.subr.mxu0 0.0
    %1579 = vmatpush2.msra.mxu0 0.0
    %1580 = vmatprep.subr.mxu0 0.0
    %1581 = vmatpush2.msra.mxu0 0.0
    %1582 = vmatprep.subr.mxu0 0.0
    %1583 = vmatpush2.msra.mxu0 0.0
    %1584 = vmatprep.subr.mxu0 0.0
    %1585 = vmatpush2.msra.mxu0 0.0
    %1586 = vmatprep.subr.mxu0 0.0
    %1587 = vmatpush2.msra.mxu0 0.0
    %1588 = vmatprep.mubr.f32.mxu0 0.0
    %1589 = vmatmul.mubr.f32.gmra.mxu0 %v1519
    %v1590 = vpop.f32.mrf.mxu0
    %v1591 = vadd.f32 %v1516, %v1590
    %v1592 = vpop.f32.mrf.mxu0
    %1593 = vdwg.mxu0
    %v1594 = vmax.f32 %v1591, 0.0
    %vm1595 = vcmp.ne.f32.partialorder %v1591, %v1591
    %v1596 = vadd.f32 %v1591, 0.0
    %v1597 = vand.u32 2147483647, %v1591
    %v1598 = vsub.f32 0.0, %v1597
    %v1599 = vmul.f32 %v1598, 1.442695
    %v1600 = vpow.pop %v1599
    %v1601 = vadd.f32 %v1600, 1.0
    %v1602 = vlog2.pop %v1601
    %v1603 = vmul.f32 %v1602, 0.6931472
    %v1604 = vmul.f32 -0.5, %v1600
    %v1605 = vadd.f32 %v1604, 1.0
    %v1606 = vmul.f32 %v1605, %v1600
    %v1607 = vand.u32 2147483647, %v1600
    %vm1608 = vcmp.lt.f32.partialorder %v1607, 0.0004427343
    %v1609 = vsel %vm1608, %v1606, %v1603
    %v1610 = vadd.f32 %v1594, %v1609
    %v1611 = vsel %vm1595, %v1596, %v1610
    %v1612 = vmul.f32 %v1426, %v1505
    %v1613 = vsel %vm630, %v1612, 0.0
    %1614 = vadd.xlane.f32.xlu0 %v1613
    %v1615 = vpop.xlane.xlu0 %1614
    %v1616 = vmul.f32 %v1611, %v1267
    %v1617 = vmul.f32 %v1616, %v1615
    %s1618 = scalar_lea.vmem %s11, 1
    %v1619 = vld [vmem:[%s1618] sm:$0x1]
    %v1621 = vlaneseq
    %v1622 = vshrl.u32 %v1621, 7
    %v1623 = vsub.s32 0, %v1622
    %v1624 = vrot.slane %v1619, %v1623
    %v1626 = vmul.f32 %v1267, %v1624
    %v1627 = vadd.f32 %v1617, %v1626
    %v1628 = vlaneseq
    %v1629 = vshrl.u32 %v1628, 7
    %v1630 = vsub.s32 0, %v1629
    %v1631 = vrot.slane %v1627, %v1630
    %v1632 = vlaneseq
    %v1633 = vshrl.u32 %v1632, 7
    %v1634 = vsub.s32 1, %v1633
    %v1635 = vrot.slane %v1627, %v1634
    %v1636 = vxor.u32 %v1154, 2147483648
    %v1637 = vxor.u32 %v1159, 2147483648
    %v1638 = vmul.f32 %v1636, 1.442695
    %v1639 = vpow.pop %v1638
    %v1640 = vmul.f32 %v1637, 1.442695
    %v1641 = vpow.pop %v1640
    %v1642 = vadd.f32 %v1639, 1.0
    %v1643 = vadd.f32 %v1641, 1.0
    %v1644 = vrcp.pop %v1642
    %v1645 = vmul.f32 1.0, %v1644
    %v1646 = vrcp.pop %v1643
    %v1647 = vmul.f32 1.0, %v1646
    %v1648 = vmul.f32 %v1154, %v1645
    %v1649 = vmul.f32 %v1159, %v1647
    %v1650 = vmul.f32 %v1631, %v1648
    %v1651 = vmul.f32 %v1635, %v1649
    %s1652 = scalar_lea.vmem %s12, 64
    %v1653 = vld [vmem:[%s1652] sm:$0xff]
    %v1654 = vld [vmem:[%s1652 + $0x8] sm:$0xff]
    %v1655 = vld [vmem:[%s1652 + $0x10] sm:$0xff]
    %v1656 = vld [vmem:[%s1652 + $0x18] sm:$0xff]
    %v1657 = vld [vmem:[%s1652 + $0x20] sm:$0xff]
    %v1658 = vld [vmem:[%s1652 + $0x28] sm:$0xff]
    %v1659 = vld [vmem:[%s1652 + $0x30] sm:$0xff]
    %v1660 = vld [vmem:[%s1652 + $0x38] sm:$0xff]
    %v1662 = vsel %vm295, %v1650, 0
    %v1665 = vsel %vm295, %v1651, 0
    %1667 = vmatprep.subr.mxu0 0.0
    %1668 = vmatpush1.msra.mxu0 0.0
    %1669 = vmatprep.subr.mxu0 0.0
    %1670 = vmatpush1.msra.mxu0 0.0
    %1671 = vmatprep.subr.mxu0 0.0
    %1672 = vmatpush1.msra.mxu0 0.0
    %1673 = vmatprep.subr.mxu0 0.0
    %1674 = vmatpush1.msra.mxu0 0.0
    %1675 = vmatprep.subr.mxu0 0.0
    %1676 = vmatpush1.msra.mxu0 0.0
    %1677 = vmatprep.subr.mxu0 0.0
    %1678 = vmatpush1.msra.mxu0 0.0
    %1679 = vmatprep.subr.mxu0 0.0
    %1680 = vmatpush1.msra.mxu0 0.0
    %1681 = vmatprep.subr.mxu0 0.0
    %1682 = vmatpush1.msra.mxu0 0.0
    %1683 = vmatprep.subr.mxu0 0.0
    %1684 = vmatpush1.msra.mxu0 %v1660
    %1685 = vmatprep.subr.mxu0 0.0
    %1686 = vmatpush1.msra.mxu0 %v1659
    %1687 = vmatprep.subr.mxu0 0.0
    %1688 = vmatpush1.msra.mxu0 %v1658
    %1689 = vmatprep.subr.mxu0 0.0
    %1690 = vmatpush1.msra.mxu0 %v1657
    %1691 = vmatprep.subr.mxu0 0.0
    %1692 = vmatpush1.msra.mxu0 %v1656
    %1693 = vmatprep.subr.mxu0 0.0
    %1694 = vmatpush1.msra.mxu0 %v1655
    %1695 = vmatprep.subr.mxu0 0.0
    %1696 = vmatpush1.msra.mxu0 %v1654
    %1697 = vmatprep.subr.mxu0 0.0
    %1698 = vmatpush1.msra.mxu0 %v1653
    %1699 = vmatprep.subr.mxu0 0.0
    %1700 = vmatpush2.msra.mxu0 0.0
    %1701 = vmatprep.subr.mxu0 0.0
    %1702 = vmatpush2.msra.mxu0 0.0
    %1703 = vmatprep.subr.mxu0 0.0
    %1704 = vmatpush2.msra.mxu0 0.0
    %1705 = vmatprep.subr.mxu0 0.0
    %1706 = vmatpush2.msra.mxu0 0.0
    %1707 = vmatprep.subr.mxu0 0.0
    %1708 = vmatpush2.msra.mxu0 0.0
    %1709 = vmatprep.subr.mxu0 0.0
    %1710 = vmatpush2.msra.mxu0 0.0
    %1711 = vmatprep.subr.mxu0 0.0
    %1712 = vmatpush2.msra.mxu0 0.0
    %1713 = vmatprep.subr.mxu0 0.0
    %1714 = vmatpush2.msra.mxu0 0.0
    %1715 = vmatprep.subr.mxu0 0.0
    %1716 = vmatpush2.msra.mxu0 0.0
    %1717 = vmatprep.subr.mxu0 0.0
    %1718 = vmatpush2.msra.mxu0 0.0
    %1719 = vmatprep.subr.mxu0 0.0
    %1720 = vmatpush2.msra.mxu0 0.0
    %1721 = vmatprep.subr.mxu0 0.0
    %1722 = vmatpush2.msra.mxu0 0.0
    %1723 = vmatprep.subr.mxu0 0.0
    %1724 = vmatpush2.msra.mxu0 0.0
    %1725 = vmatprep.subr.mxu0 0.0
    %1726 = vmatpush2.msra.mxu0 0.0
    %1727 = vmatprep.subr.mxu0 0.0
    %1728 = vmatpush2.msra.mxu0 0.0
    %1729 = vmatprep.subr.mxu0 0.0
    %1730 = vmatpush2.msra.mxu0 0.0
    %1731 = vmatprep.mubr.f32.mxu0 0.0
    %1732 = vmatmul.mubr.f32.gmra.mxu0 %v1662
    %v1733 = vpop.f32.mrf.mxu0
    %v1734 = vadd.f32 0.0, %v1733
    %v1735 = vpop.f32.mrf.mxu0
    %1736 = vmatprep.mubr.f32.mxu0 0.0
    %1737 = vmatmul.mubr.f32.gmra.mxu0 %v1665
    %v1738 = vpop.f32.mrf.mxu0
    %v1739 = vadd.f32 0.0, %v1738
    %v1740 = vpop.f32.mrf.mxu0
    %1741 = vdwg.mxu0
    %v1742 = vadd.f32 %v1048, %v1734
    %v1743 = vadd.f32 %v1049, %v1739
    %s1744 = scalar_lea.vmem %s13, 1
    %v1745 = vld [vmem:[%s1744] sm:$0x1]
    %s1746 = scalar_lea.vmem %s14, 1
    %v1747 = vld [vmem:[%s1746] sm:$0x1]
    %v1748 = vsel %vm73, %v1742, 0.0
    %1749 = vadd.xlane.f32.xlu0 %v1748
    %v1750 = vpop.xlane.xlu0 %1749
    %v1751 = vsel %vm73, %v1743, 0.0
    %1752 = vadd.xlane.f32.xlu0 %v1751
    %v1753 = vpop.xlane.xlu0 %1752
    %v1754 = vmul.f32 %v1750, %v80
    %v1755 = vmul.f32 %v1753, %v80
    %v1756 = vsub.f32 %v1742, %v1754
    %v1757 = vsub.f32 %v1743, %v1755
    %v1758 = vmul.f32 %v1756, %v1756
    %v1759 = vmul.f32 %v1757, %v1757
    %v1760 = vsel %vm73, %v1758, 0.0
    %1761 = vadd.xlane.f32.xlu0 %v1760
    %v1762 = vpop.xlane.xlu0 %1761
    %v1763 = vsel %vm73, %v1759, 0.0
    %1764 = vadd.xlane.f32.xlu0 %v1763
    %v1765 = vpop.xlane.xlu0 %1764
    %v1766 = vmul.f32 %v1762, %v80
    %v1767 = vmul.f32 %v1765, %v80
    %v1768 = vadd.f32 %v1766, 1e-05
    %v1769 = vadd.f32 %v1767, 1e-05
    %v1770 = vrsqrt.pop %v1768
    %v1771 = vrsqrt.pop %v1769
    %v1772 = vmul.f32 %v1756, %v1770
    %v1773 = vmul.f32 %v1757, %v1771
    %v1775 = vlaneseq
    %v1776 = vshrl.u32 %v1775, 7
    %v1777 = vsub.s32 0, %v1776
    %v1778 = vrot.slane %v1745, %v1777
    %v1780 = vmul.f32 %v1772, %v1778
    %v1781 = vmul.f32 %v1773, %v1778
    %v1783 = vlaneseq
    %v1784 = vshrl.u32 %v1783, 7
    %v1785 = vsub.s32 0, %v1784
    %v1786 = vrot.slane %v1747, %v1785
    %v1788 = vadd.f32 %v1780, %v1786
    %v1789 = vadd.f32 %v1781, %v1786
    %s1790 = scalar_lea.vmem %s15, 32
    %v1791 = vld [vmem:[%s1790] sm:$0xff]
    %v1792 = vld [vmem:[%s1790 + $0x8] sm:$0xff]
    %v1793 = vld [vmem:[%s1790 + $0x10] sm:$0xff]
    %v1794 = vld [vmem:[%s1790 + $0x18] sm:$0xff]
    %s1795 = scalar_lea.vmem %s16, 1
    %v1796 = vld [vmem:[%s1795] sm:$0x1]
    %v1798 = vlaneseq
    %v1799 = vshrl.u32 %v1798, 7
    %v1800 = vsub.s32 0, %v1799
    %v1801 = vrot.slane %v1796, %v1800
    %v1804 = vsel %vm73, %v1788, 0
    %v1807 = vsel %vm73, %v1789, 0
    %1809 = vmatprep.subr.mxu0 0.0
    %1810 = vmatpush1.msra.mxu0 0.0
    %1811 = vmatprep.subr.mxu0 0.0
    %1812 = vmatpush1.msra.mxu0 0.0
    %1813 = vmatprep.subr.mxu0 0.0
    %1814 = vmatpush1.msra.mxu0 0.0
    %1815 = vmatprep.subr.mxu0 0.0
    %1816 = vmatpush1.msra.mxu0 0.0
    %1817 = vmatprep.subr.mxu0 0.0
    %1818 = vmatpush1.msra.mxu0 0.0
    %1819 = vmatprep.subr.mxu0 0.0
    %1820 = vmatpush1.msra.mxu0 0.0
    %1821 = vmatprep.subr.mxu0 0.0
    %1822 = vmatpush1.msra.mxu0 0.0
    %1823 = vmatprep.subr.mxu0 0.0
    %1824 = vmatpush1.msra.mxu0 0.0
    %1825 = vmatprep.subr.mxu0 0.0
    %1826 = vmatpush1.msra.mxu0 0.0
    %1827 = vmatprep.subr.mxu0 0.0
    %1828 = vmatpush1.msra.mxu0 0.0
    %1829 = vmatprep.subr.mxu0 0.0
    %1830 = vmatpush1.msra.mxu0 0.0
    %1831 = vmatprep.subr.mxu0 0.0
    %1832 = vmatpush1.msra.mxu0 0.0
    %1833 = vmatprep.subr.mxu0 0.0
    %1834 = vmatpush1.msra.mxu0 %v1794
    %1835 = vmatprep.subr.mxu0 0.0
    %1836 = vmatpush1.msra.mxu0 %v1793
    %1837 = vmatprep.subr.mxu0 0.0
    %1838 = vmatpush1.msra.mxu0 %v1792
    %1839 = vmatprep.subr.mxu0 0.0
    %1840 = vmatpush1.msra.mxu0 %v1791
    %1841 = vmatprep.subr.mxu0 0.0
    %1842 = vmatpush2.msra.mxu0 0.0
    %1843 = vmatprep.subr.mxu0 0.0
    %1844 = vmatpush2.msra.mxu0 0.0
    %1845 = vmatprep.subr.mxu0 0.0
    %1846 = vmatpush2.msra.mxu0 0.0
    %1847 = vmatprep.subr.mxu0 0.0
    %1848 = vmatpush2.msra.mxu0 0.0
    %1849 = vmatprep.subr.mxu0 0.0
    %1850 = vmatpush2.msra.mxu0 0.0
    %1851 = vmatprep.subr.mxu0 0.0
    %1852 = vmatpush2.msra.mxu0 0.0
    %1853 = vmatprep.subr.mxu0 0.0
    %1854 = vmatpush2.msra.mxu0 0.0
    %1855 = vmatprep.subr.mxu0 0.0
    %1856 = vmatpush2.msra.mxu0 0.0
    %1857 = vmatprep.subr.mxu0 0.0
    %1858 = vmatpush2.msra.mxu0 0.0
    %1859 = vmatprep.subr.mxu0 0.0
    %1860 = vmatpush2.msra.mxu0 0.0
    %1861 = vmatprep.subr.mxu0 0.0
    %1862 = vmatpush2.msra.mxu0 0.0
    %1863 = vmatprep.subr.mxu0 0.0
    %1864 = vmatpush2.msra.mxu0 0.0
    %1865 = vmatprep.subr.mxu0 0.0
    %1866 = vmatpush2.msra.mxu0 0.0
    %1867 = vmatprep.subr.mxu0 0.0
    %1868 = vmatpush2.msra.mxu0 0.0
    %1869 = vmatprep.subr.mxu0 0.0
    %1870 = vmatpush2.msra.mxu0 0.0
    %1871 = vmatprep.subr.mxu0 0.0
    %1872 = vmatpush2.msra.mxu0 0.0
    %1873 = vmatprep.mubr.f32.mxu0 0.0
    %1874 = vmatmul.mubr.f32.gmra.mxu0 %v1804
    %v1875 = vpop.f32.mrf.mxu0
    %v1876 = vadd.f32 %v1801, %v1875
    %v1877 = vpop.f32.mrf.mxu0
    %1878 = vmatprep.mubr.f32.mxu0 0.0
    %1879 = vmatmul.mubr.f32.gmra.mxu0 %v1807
    %v1880 = vpop.f32.mrf.mxu0
    %v1881 = vadd.f32 %v1801, %v1880
    %v1882 = vpop.f32.mrf.mxu0
    %1883 = vdwg.mxu0
    %v1884 = vmul.f32 %v1876, 0.5
    %v1885 = vmul.f32 %v1881, 0.5
    %v1886 = vmul.f32 %v1876, 0.70710677
    %v1887 = vmul.f32 %v1881, 0.70710677
    %v1888 = vand.u32 2147483647, %v1886
    %v1889 = vand.u32 2147483647, %v1887
    %v1890 = vmul.f32 %v1888, 0.3275911
    %v1891 = vmul.f32 %v1889, 0.3275911
    %v1892 = vadd.f32 %v1890, 1.0
    %v1893 = vadd.f32 %v1891, 1.0
    %v1894 = vrcp.pop %v1892
    %v1895 = vmul.f32 1.0, %v1894
    %v1896 = vrcp.pop %v1893
    %v1897 = vmul.f32 1.0, %v1896
    %v1898 = vmul.f32 %v1895, 1.0614054
    %v1899 = vmul.f32 %v1897, 1.0614054
    %v1900 = vadd.f32 %v1898, -1.4531521
    %v1901 = vadd.f32 %v1899, -1.4531521
    %v1902 = vmul.f32 %v1900, %v1895
    %v1903 = vmul.f32 %v1901, %v1897
    %v1904 = vadd.f32 %v1902, 1.4214138
    %v1905 = vadd.f32 %v1903, 1.4214138
    %v1906 = vmul.f32 %v1904, %v1895
    %v1907 = vmul.f32 %v1905, %v1897
    %v1908 = vadd.f32 %v1906, -0.28449672
    %v1909 = vadd.f32 %v1907, -0.28449672
    %v1910 = vmul.f32 %v1908, %v1895
    %v1911 = vmul.f32 %v1909, %v1897
    %v1912 = vadd.f32 %v1910, 0.2548296
    %v1913 = vadd.f32 %v1911, 0.2548296
    %v1914 = vmul.f32 %v1912, %v1895
    %v1915 = vmul.f32 %v1913, %v1897
    %v1916 = vsub.f32 0.0, %v1888
    %v1917 = vsub.f32 0.0, %v1889
    %v1918 = vmul.f32 %v1916, %v1888
    %v1919 = vmul.f32 %v1917, %v1889
    %v1920 = vmul.f32 %v1918, 1.442695
    %v1921 = vpow.pop %v1920
    %v1922 = vmul.f32 %v1919, 1.442695
    %v1923 = vpow.pop %v1922
    %v1924 = vmul.f32 %v1914, %v1921
    %v1925 = vmul.f32 %v1915, %v1923
    %v1926 = vsub.f32 1.0, %v1924
    %v1927 = vsub.f32 1.0, %v1925
    %vm1928 = vcmp.lt.f32.partialorder %v1886, 0.0
    %vm1929 = vcmp.lt.f32.partialorder %v1887, 0.0
    %v1930 = vsub.f32 0.0, %v1926
    %v1931 = vsub.f32 0.0, %v1927
    %v1932 = vsel %vm1928, %v1930, %v1926
    %v1933 = vsel %vm1929, %v1931, %v1927
    %v1934 = vadd.f32 %v1932, 1.0
    %v1935 = vadd.f32 %v1933, 1.0
    %v1936 = vmul.f32 %v1884, %v1934
    %v1937 = vmul.f32 %v1885, %v1935
    %s1938 = scalar_lea.vmem %s17, 64
    %v1939 = vld [vmem:[%s1938] sm:$0xff]
    %v1940 = vld [vmem:[%s1938 + $0x8] sm:$0xff]
    %v1941 = vld [vmem:[%s1938 + $0x10] sm:$0xff]
    %v1942 = vld [vmem:[%s1938 + $0x18] sm:$0xff]
    %v1943 = vld [vmem:[%s1938 + $0x20] sm:$0xff]
    %v1944 = vld [vmem:[%s1938 + $0x28] sm:$0xff]
    %v1945 = vld [vmem:[%s1938 + $0x30] sm:$0xff]
    %v1946 = vld [vmem:[%s1938 + $0x38] sm:$0xff]
    %v1948 = vsel %vm295, %v1936, 0
    %v1951 = vsel %vm295, %v1937, 0
    %1953 = vmatprep.subr.mxu0 0.0
    %1954 = vmatpush1.msra.mxu0 0.0
    %1955 = vmatprep.subr.mxu0 0.0
    %1956 = vmatpush1.msra.mxu0 0.0
    %1957 = vmatprep.subr.mxu0 0.0
    %1958 = vmatpush1.msra.mxu0 0.0
    %1959 = vmatprep.subr.mxu0 0.0
    %1960 = vmatpush1.msra.mxu0 0.0
    %1961 = vmatprep.subr.mxu0 0.0
    %1962 = vmatpush1.msra.mxu0 0.0
    %1963 = vmatprep.subr.mxu0 0.0
    %1964 = vmatpush1.msra.mxu0 0.0
    %1965 = vmatprep.subr.mxu0 0.0
    %1966 = vmatpush1.msra.mxu0 0.0
    %1967 = vmatprep.subr.mxu0 0.0
    %1968 = vmatpush1.msra.mxu0 0.0
    %1969 = vmatprep.subr.mxu0 0.0
    %1970 = vmatpush1.msra.mxu0 %v1946
    %1971 = vmatprep.subr.mxu0 0.0
    %1972 = vmatpush1.msra.mxu0 %v1945
    %1973 = vmatprep.subr.mxu0 0.0
    %1974 = vmatpush1.msra.mxu0 %v1944
    %1975 = vmatprep.subr.mxu0 0.0
    %1976 = vmatpush1.msra.mxu0 %v1943
    %1977 = vmatprep.subr.mxu0 0.0
    %1978 = vmatpush1.msra.mxu0 %v1942
    %1979 = vmatprep.subr.mxu0 0.0
    %1980 = vmatpush1.msra.mxu0 %v1941
    %1981 = vmatprep.subr.mxu0 0.0
    %1982 = vmatpush1.msra.mxu0 %v1940
    %1983 = vmatprep.subr.mxu0 0.0
    %1984 = vmatpush1.msra.mxu0 %v1939
    %1985 = vmatprep.subr.mxu0 0.0
    %1986 = vmatpush2.msra.mxu0 0.0
    %1987 = vmatprep.subr.mxu0 0.0
    %1988 = vmatpush2.msra.mxu0 0.0
    %1989 = vmatprep.subr.mxu0 0.0
    %1990 = vmatpush2.msra.mxu0 0.0
    %1991 = vmatprep.subr.mxu0 0.0
    %1992 = vmatpush2.msra.mxu0 0.0
    %1993 = vmatprep.subr.mxu0 0.0
    %1994 = vmatpush2.msra.mxu0 0.0
    %1995 = vmatprep.subr.mxu0 0.0
    %1996 = vmatpush2.msra.mxu0 0.0
    %1997 = vmatprep.subr.mxu0 0.0
    %1998 = vmatpush2.msra.mxu0 0.0
    %1999 = vmatprep.subr.mxu0 0.0
    %2000 = vmatpush2.msra.mxu0 0.0
    %2001 = vmatprep.subr.mxu0 0.0
    %2002 = vmatpush2.msra.mxu0 0.0
    %2003 = vmatprep.subr.mxu0 0.0
    %2004 = vmatpush2.msra.mxu0 0.0
    %2005 = vmatprep.subr.mxu0 0.0
    %2006 = vmatpush2.msra.mxu0 0.0
    %2007 = vmatprep.subr.mxu0 0.0
    %2008 = vmatpush2.msra.mxu0 0.0
    %2009 = vmatprep.subr.mxu0 0.0
    %2010 = vmatpush2.msra.mxu0 0.0
    %2011 = vmatprep.subr.mxu0 0.0
    %2012 = vmatpush2.msra.mxu0 0.0
    %2013 = vmatprep.subr.mxu0 0.0
    %2014 = vmatpush2.msra.mxu0 0.0
    %2015 = vmatprep.subr.mxu0 0.0
    %2016 = vmatpush2.msra.mxu0 0.0
    %2017 = vmatprep.mubr.f32.mxu0 0.0
    %2018 = vmatmul.mubr.f32.gmra.mxu0 %v1948
    %v2019 = vpop.f32.mrf.mxu0
    %v2020 = vadd.f32 0.0, %v2019
    %v2021 = vpop.f32.mrf.mxu0
    %2022 = vmatprep.mubr.f32.mxu0 0.0
    %2023 = vmatmul.mubr.f32.gmra.mxu0 %v1951
    %v2024 = vpop.f32.mrf.mxu0
    %v2025 = vadd.f32 0.0, %v2024
    %v2026 = vpop.f32.mrf.mxu0
    %2027 = vdwg.mxu0
    %v2028 = vadd.f32 %v1742, %v2020
    %v2029 = vadd.f32 %v1743, %v2025
    %s2030 = scalar_lea.vmem %s18, 1
    %v2031 = vld [vmem:[%s2030] sm:$0x1]
    %v2033 = vlaneseq
    %v2034 = vshrl.u32 %v2033, 7
    %v2035 = vsub.s32 0, %v2034
    %v2036 = vrot.slane %v2031, %v2035
    %v2038 = vadd.f32 %v2028, %v2036
    %v2039 = vadd.f32 %v2029, %v2036
    %v2040 = vld [vmem:[%s19] sm:$0x1]
    %v2041 = vld [vmem:[%s20] sm:$0x1]
    %v2042 = vsel %vm73, %v2038, 0.0
    %2043 = vadd.xlane.f32.xlu0 %v2042
    %v2044 = vpop.xlane.xlu0 %2043
    %v2045 = vsel %vm73, %v2039, 0.0
    %2046 = vadd.xlane.f32.xlu0 %v2045
    %v2047 = vpop.xlane.xlu0 %2046
    %v2048 = vmul.f32 %v2044, %v80
    %v2049 = vmul.f32 %v2047, %v80
    %v2050 = vsub.f32 %v2038, %v2048
    %v2051 = vsub.f32 %v2039, %v2049
    %v2052 = vmul.f32 %v2050, %v2050
    %v2053 = vmul.f32 %v2051, %v2051
    %v2054 = vsel %vm73, %v2052, 0.0
    %2055 = vadd.xlane.f32.xlu0 %v2054
    %v2056 = vpop.xlane.xlu0 %2055
    %v2057 = vsel %vm73, %v2053, 0.0
    %2058 = vadd.xlane.f32.xlu0 %v2057
    %v2059 = vpop.xlane.xlu0 %2058
    %v2060 = vmul.f32 %v2056, %v80
    %v2061 = vmul.f32 %v2059, %v80
    %v2062 = vadd.f32 %v2060, 1e-05
    %v2063 = vadd.f32 %v2061, 1e-05
    %v2064 = vrsqrt.pop %v2062
    %v2065 = vrsqrt.pop %v2063
    %v2066 = vmul.f32 %v2050, %v2064
    %v2067 = vmul.f32 %v2051, %v2065
    %v2069 = vlaneseq
    %v2070 = vshrl.u32 %v2069, 7
    %v2071 = vsub.s32 0, %v2070
    %v2072 = vrot.slane %v2040, %v2071
    %v2074 = vmul.f32 %v2066, %v2072
    %v2075 = vmul.f32 %v2067, %v2072
    %v2077 = vlaneseq
    %v2078 = vshrl.u32 %v2077, 7
    %v2079 = vsub.s32 0, %v2078
    %v2080 = vrot.slane %v2041, %v2079
    %v2082 = vadd.f32 %v2074, %v2080
    %v2083 = vadd.f32 %v2075, %v2080
    %2084 = vst.msk [vmem:[#allocation2] sm:$0xff] %vm73, %v2082
    %2085 = vst.msk [vmem:[#allocation2 + $0x8] sm:$0xff] %vm73, %v2083
    // Predicated region
    $region86: #{tpu_custom_call.1} parent=1 // pred_check
      _
    $region87: #{tpu_custom_call.1} parent=1 // pred_check_branch
      %2087 = sbr.rel (0) target = $region89
    $region88: #{tpu_custom_call.1} parent=1 // pred_region
      %s2089 = ssub.s32 256, 256
      %2090 = vsyncadd [#allocation3], %s2089
      %s2091 = sshll.u32 [#allocation2], 4
      %s2092 = int_to_ptr.vmem [resolvable:$true] %s2091
      %2097 = dma.vmem_to_hbm [thread:$0]  %s2092, 256, %s21, [#allocation3], 128, 128, 8
    $region89: #{tpu_custom_call.1} parent=1 // pred_fallthru
      _
    // Predicated region
    $region90: #{tpu_custom_call.1} parent=1 // pred_check
      _
    $region91: #{tpu_custom_call.1} parent=1 // pred_check_branch
      %2099 = sbr.rel (0) target = $region93
    $region92: #{tpu_custom_call.1} parent=1 // pred_region
      %2100 = dma.done [#allocation3], 256
    $region93: #{tpu_custom_call.1} parent=1 // pred_fallthru
      _
    %2101 = vsyncpa [#allocation3], 1

</llo_original>
